<compile_context>
chip_gen: v7x
topology: tpu7x:2x2x1
jax: 0.10.0
libtpu: 0.0.40
codegen_flags: <defaults>
</compile_context>

<pallas_src>
import math

import jax
import jax.numpy as jnp
from jax.experimental import pallas as pl
from jax.experimental.pallas import tpu as pltpu

# ---------------- scaled-down BERT-base-uncased config ----------------
B, S = 2, 8              # batch, sequence length
H, NH, DH = 128, 2, 64   # hidden, heads, head dim   (BERT-base: 768, 12, 64)
I = 256                  # FFN intermediate           (BERT-base: 3072)
L = 2                    # encoder layers             (BERT-base: 12)
VOCAB = 128
TYPE_VOCAB = 2
MAX_POS = 64
EPS = 1e-12
DTYPE = jnp.float32
LANES = 128              # lane-padded width of the classifier output


# ------------------------------ fused encoder kernel ------------------------------
def _encoder_kernel(x_ref, emb_g_ref, emb_b_ref, bias_ref,
                    qkv_w_ref, qkv_b_ref, ao_w_ref, ao_b_ref,
                    ln1_g_ref, ln1_b_ref,
                    i_w_ref, i_b_ref, o_w_ref, o_b_ref,
                    ln2_g_ref, ln2_b_ref,
                    cls_w_ref, cls_b_ref,
                    logits_ref, x_scr):
    l = pl.program_id(0)

    def layernorm(v, g, b):
        mean = jnp.mean(v, axis=-1, keepdims=True)
        var = jnp.mean((v - mean) ** 2, axis=-1, keepdims=True)
        return (v - mean) * jax.lax.rsqrt(var + EPS) * g + b

    # ---- layer 0: embedding LayerNorm; result becomes the running activation,
    #      kept resident in a VMEM scratch buffer across the whole grid ----
    @pl.when(l == 0)
    def _():
        x_scr[...] = layernorm(x_ref[...].astype(jnp.float32),
                               emb_g_ref[...], emb_b_ref[...])
        # embedding dropout: identity at inference

    x = x_scr[...]                                                # (B*S, H) f32

    # ---- fused QKV projection: one (B*S,H) x (H,3H) matmul ----
    qkv = jnp.dot(x, qkv_w_ref[0],
                  preferred_element_type=jnp.float32) + qkv_b_ref[0]
    q = qkv[:, 0:H]
    k = qkv[:, H:2 * H]
    v = qkv[:, 2 * H:3 * H]

    bias = bias_ref[...]                                          # (B, S) additive
    scale = 1.0 / math.sqrt(DH)

    # ---- per (batch, head) attention with static 64-lane head slices ----
    ctx_rows = []
    for b in range(B):
        r0 = b * S
        bias_b = bias[b:b + 1, :]                                 # (1, S)
        head_ctx = []
        for h in range(NH):
            c0 = h * DH
            q_bh = q[r0:r0 + S, c0:c0 + DH]                       # (S, DH)
            k_bh = k[r0:r0 + S, c0:c0 + DH]
            v_bh = v[r0:r0 + S, c0:c0 + DH]
            s = jnp.einsum("qd,kd->qk", q_bh, k_bh,
                           preferred_element_type=jnp.float32) * scale + bias_b
            s = s - jnp.max(s, axis=-1, keepdims=True)
            p = jnp.exp(s)
            p = p * pl.reciprocal(jnp.sum(p, axis=-1, keepdims=True), approx=True)
            head_ctx.append(jnp.dot(p, v_bh,
                                    preferred_element_type=jnp.float32))
        ctx_rows.append(jnp.concatenate(head_ctx, axis=-1))       # (S, H)
    ctx = jnp.concatenate(ctx_rows, axis=0)                       # (B*S, H)

    # ---- attention output projection + residual + LayerNorm ----
    attn = jnp.dot(ctx, ao_w_ref[0],
                   preferred_element_type=jnp.float32) + ao_b_ref[0]
    x = layernorm(attn + x, ln1_g_ref[0], ln1_b_ref[0])

    # ---- FFN with exact erf GELU + residual + LayerNorm ----
    inter = jnp.dot(x, i_w_ref[0],
                    preferred_element_type=jnp.float32) + i_b_ref[0]
    inter = 0.5 * inter * (1.0 + jax.lax.erf(inter * (1.0 / math.sqrt(2.0))))
    ffn = jnp.dot(inter, o_w_ref[0],
                  preferred_element_type=jnp.float32) + o_b_ref[0]
    x = layernorm(ffn + x, ln2_g_ref[0], ln2_b_ref[0])

    x_scr[...] = x

    # ---- classifier on [CLS] rows, lane-padded to 128, last layer only ----
    # bert_drop(0.3) on the pooled [CLS] vector: identity at inference.
    @pl.when(l == pl.num_programs(0) - 1)
    def _():
        cls = jnp.concatenate([x[b * S:b * S + 1, :] for b in range(B)], axis=0)
        logits_ref[...] = (jnp.dot(cls, cls_w_ref[...],
                                   preferred_element_type=jnp.float32)
                           + cls_b_ref[...]).astype(logits_ref.dtype)


def fused_encoder(x, emb_g, emb_b, attn_bias,
                  qkv_w, qkv_b, ao_w, ao_b, ln1_g, ln1_b,
                  i_w, i_b, o_w, o_b, ln2_g, ln2_b,
                  cls_w, cls_b):
    BS = B * S

    def const_spec(shape):
        return pl.BlockSpec(shape, lambda l: (0,) * len(shape))

    def layer_spec(shape):
        return pl.BlockSpec((1,) + shape, lambda l: (l,) + (0,) * len(shape))

    grid_spec = pltpu.PrefetchScalarGridSpec(
        num_scalar_prefetch=0,
        grid=(L,),
        in_specs=[
            const_spec((BS, H)),            # embeddings (DMA'd once)
            const_spec((1, H)),             # emb LN gamma
            const_spec((1, H)),             # emb LN beta
            const_spec((B, S)),             # additive attention bias
            layer_spec((H, 3 * H)),         # qkv weight   (double-buffered over l)
            layer_spec((1, 3 * H)),         # qkv bias
            layer_spec((H, H)),             # attn output weight
            layer_spec((1, H)),             # attn output bias
            layer_spec((1, H)),             # attn LN gamma
            layer_spec((1, H)),             # attn LN beta
            layer_spec((H, I)),             # FFN in weight
            layer_spec((1, I)),             # FFN in bias
            layer_spec((I, H)),             # FFN out weight
            layer_spec((1, H)),             # FFN out bias
            layer_spec((1, H)),             # out LN gamma
            layer_spec((1, H)),             # out LN beta
            const_spec((H, LANES)),         # classifier weight (lane-padded)
            const_spec((1, LANES)),         # classifier bias   (lane-padded)
        ],
        out_specs=const_spec((B, LANES)),   # lane-padded logits (only HBM output)
        scratch_shapes=[pltpu.VMEM((BS, H), jnp.float32)],  # resident activations
    )
    return pl.pallas_call(
        _encoder_kernel,
        out_shape=jax.ShapeDtypeStruct((B, LANES), DTYPE),
        grid_spec=grid_spec,
        compiler_params=pltpu.CompilerParams(
            dimension_semantics=("arbitrary",)),   # layers are sequential
    )(x, emb_g, emb_b, attn_bias,
      qkv_w, qkv_b, ao_w, ao_b, ln1_g, ln1_b,
      i_w, i_b, o_w, o_b, ln2_g, ln2_b,
      cls_w, cls_b)


# ------------------------------ parameters ------------------------------
def init_params(key):
    keys = iter(jax.random.split(key, 32))

    def nrm(shape, scale=0.02):
        return (scale * jax.random.normal(next(keys), shape)).astype(DTYPE)

    # Per-layer weights stacked along a leading L axis so the fused kernel can
    # stream layer l+1's weights behind layer l's compute.
    return {
        "word_emb": nrm((VOCAB, H)),
        "pos_emb": nrm((MAX_POS, H)),
        "type_emb": nrm((TYPE_VOCAB, H)),
        "emb_ln_g": jnp.ones((H,), DTYPE),
        "emb_ln_b": jnp.zeros((H,), DTYPE),
        "qkv_w": nrm((L, H, 3 * H)),            # merged Q|K|V projection
        "qkv_b": jnp.zeros((L, 1, 3 * H), DTYPE),
        "ao_w": nrm((L, H, H)),
        "ao_b": jnp.zeros((L, 1, H), DTYPE),
        "ln1_g": jnp.ones((L, 1, H), DTYPE),
        "ln1_b": jnp.zeros((L, 1, H), DTYPE),
        "i_w": nrm((L, H, I)),
        "i_b": jnp.zeros((L, 1, I), DTYPE),
        "o_w": nrm((L, I, H)),
        "o_b": jnp.zeros((L, 1, H), DTYPE),
        "ln2_g": jnp.ones((L, 1, H), DTYPE),
        "ln2_b": jnp.zeros((L, 1, H), DTYPE),
        "out_w": nrm((H, 1)),                   # self.out = nn.Linear(hidden, 1)
        "out_b": jnp.zeros((1,), DTYPE),
    }


# ------------------------------ forward ------------------------------
def bert_base_uncased_forward(params, ids, mask, token_type_ids):
    # --- embeddings (gathers are plain-JAX glue) ---
    pos_ids = jnp.arange(S)
    emb = (params["word_emb"][ids]
           + params["pos_emb"][pos_ids][None, :, :]
           + params["type_emb"][token_type_ids])
    x = emb.reshape(B * S, H).astype(DTYPE)

    # additive attention bias, computed once and shared by all layers / heads
    attn_bias = (1.0 - mask.astype(DTYPE)) * (-10000.0)           # (B, S)

    # classifier weight/bias zero-padded to a lane-dense 128-wide output
    cls_w = jnp.pad(params["out_w"], ((0, 0), (0, LANES - 1)))     # (H, 128)
    cls_b = jnp.pad(params["out_b"].reshape(1, 1), ((0, 0), (0, LANES - 1)))

    logits_pad = fused_encoder(
        x,
        params["emb_ln_g"].reshape(1, H), params["emb_ln_b"].reshape(1, H),
        attn_bias,
        params["qkv_w"], params["qkv_b"],
        params["ao_w"], params["ao_b"],
        params["ln1_g"], params["ln1_b"],
        params["i_w"], params["i_b"],
        params["o_w"], params["o_b"],
        params["ln2_g"], params["ln2_b"],
        cls_w, cls_b)

    return logits_pad[:, :1]                                       # (B, 1)


# ------------------------------ main ------------------------------
if __name__ == "__main__":
    key = jax.random.PRNGKey(0)
    pkey, ikey = jax.random.split(key)
    params = init_params(pkey)

    ids = jax.random.randint(ikey, (B, S), 0, VOCAB, dtype=jnp.int32)
    mask = jnp.ones((B, S), jnp.int32).at[:, S - 2:].set(0)        # 2 pad tokens
    token_type_ids = jnp.zeros((B, S), jnp.int32)

    out = jax.jit(bert_base_uncased_forward)(params, ids, mask, token_type_ids)
    out = jax.block_until_ready(out)
    assert out.shape == (B, 1) and out.dtype == DTYPE
    print("KERNEL_OK")
</pallas_src>

<mosaic_0001>
module attributes {stable_mosaic.version = 11 : i64} {
  func.func @_encoder_kernel(%arg0: i32, %arg1: memref<16x128xf32, #tpu.memory_space<vmem>>, %arg2: memref<1x128xf32, #tpu.memory_space<vmem>>, %arg3: memref<1x128xf32, #tpu.memory_space<vmem>>, %arg4: memref<2x8xf32, #tpu.memory_space<vmem>>, %arg5: memref<1x128x384xf32, #tpu.memory_space<vmem>>, %arg6: memref<1x1x384xf32, #tpu.memory_space<vmem>>, %arg7: memref<1x128x128xf32, #tpu.memory_space<vmem>>, %arg8: memref<1x1x128xf32, #tpu.memory_space<vmem>>, %arg9: memref<1x1x128xf32, #tpu.memory_space<vmem>>, %arg10: memref<1x1x128xf32, #tpu.memory_space<vmem>>, %arg11: memref<1x128x256xf32, #tpu.memory_space<vmem>>, %arg12: memref<1x1x256xf32, #tpu.memory_space<vmem>>, %arg13: memref<1x256x128xf32, #tpu.memory_space<vmem>>, %arg14: memref<1x1x128xf32, #tpu.memory_space<vmem>>, %arg15: memref<1x1x128xf32, #tpu.memory_space<vmem>>, %arg16: memref<1x1x128xf32, #tpu.memory_space<vmem>>, %arg17: memref<128x128xf32, #tpu.memory_space<vmem>>, %arg18: memref<1x128xf32, #tpu.memory_space<vmem>>, %arg19: memref<2x128xf32, #tpu.memory_space<vmem>>, %arg20: memref<16x128xf32, #tpu.memory_space<vmem>>) attributes {dimension_semantics = [#tpu.dimension_semantics<arbitrary>], iteration_bounds = array<i64: 2>, scalar_prefetch = 0 : i64, scratch_operands = 1 : i64, tpu.core_type = #tpu.core_type<tc>, window_params = [{pipeline_mode = #tpu.pipeline_mode<synchronous>, transform_indices = @transform_0, window_bounds = array<i64: 16, 128>}, {pipeline_mode = #tpu.pipeline_mode<synchronous>, transform_indices = @transform_1, window_bounds = array<i64: 1, 128>}, {pipeline_mode = #tpu.pipeline_mode<synchronous>, transform_indices = @transform_2, window_bounds = array<i64: 1, 128>}, {pipeline_mode = #tpu.pipeline_mode<synchronous>, transform_indices = @transform_3, window_bounds = array<i64: 2, 8>}, {transform_indices = @transform_4, window_bounds = array<i64: 1, 128, 384>}, {transform_indices = @transform_5, window_bounds = array<i64: 1, 1, 384>}, {transform_indices = @transform_6, window_bounds = array<i64: 1, 128, 128>}, {transform_indices = @transform_7, window_bounds = array<i64: 1, 1, 128>}, {transform_indices = @transform_8, window_bounds = array<i64: 1, 1, 128>}, {transform_indices = @transform_9, window_bounds = array<i64: 1, 1, 128>}, {transform_indices = @transform_10, window_bounds = array<i64: 1, 128, 256>}, {transform_indices = @transform_11, window_bounds = array<i64: 1, 1, 256>}, {transform_indices = @transform_12, window_bounds = array<i64: 1, 256, 128>}, {transform_indices = @transform_13, window_bounds = array<i64: 1, 1, 128>}, {transform_indices = @transform_14, window_bounds = array<i64: 1, 1, 128>}, {transform_indices = @transform_15, window_bounds = array<i64: 1, 1, 128>}, {pipeline_mode = #tpu.pipeline_mode<synchronous>, transform_indices = @transform_16, window_bounds = array<i64: 128, 128>}, {pipeline_mode = #tpu.pipeline_mode<synchronous>, transform_indices = @transform_17, window_bounds = array<i64: 1, 128>}, {pipeline_mode = #tpu.pipeline_mode<synchronous>, transform_indices = @transform_18, window_bounds = array<i64: 2, 128>}]} {
    %c0_i32 = arith.constant 0 : i32
    %0 = arith.cmpi eq, %arg0, %c0_i32 : i32
    %1 = arith.extui %0 : i1 to i32
    %c0_i32_0 = arith.constant 0 : i32
    %2 = arith.cmpi ne, %1, %c0_i32_0 : i32
    scf.if %2 {
      %c0_79 = arith.constant 0 : index
      %c0_80 = arith.constant 0 : index
      %183 = vector.load %arg1[%c0_79, %c0_80] : memref<16x128xf32, #tpu.memory_space<vmem>>, vector<16x128xf32>
      %c0_81 = arith.constant 0 : index
      %c0_82 = arith.constant 0 : index
      %184 = vector.load %arg2[%c0_81, %c0_82] : memref<1x128xf32, #tpu.memory_space<vmem>>, vector<1x128xf32>
      %c0_83 = arith.constant 0 : index
      %c0_84 = arith.constant 0 : index
      %185 = vector.load %arg3[%c0_83, %c0_84] : memref<1x128xf32, #tpu.memory_space<vmem>>, vector<1x128xf32>
      %cst_85 = arith.constant dense<0.000000e+00> : vector<16xf32>
      %186 = vector.multi_reduction <add>, %183, %cst_85 [1] : vector<16x128xf32> to vector<16xf32>
      %187 = vector.shape_cast %186 : vector<16xf32> to vector<16x1xf32>
      %cst_86 = arith.constant 1.280000e+02 : f32
      %188 = vector.broadcast %cst_86 : f32 to vector<16x1xf32>
      %189 = arith.divf %187, %188 : vector<16x1xf32>
      %190 = vector.broadcast %189 : vector<16x1xf32> to vector<16x128xf32>
      %191 = arith.subf %183, %190 : vector<16x128xf32>
      %192 = arith.mulf %191, %191 : vector<16x128xf32>
      %cst_87 = arith.constant dense<0.000000e+00> : vector<16xf32>
      %193 = vector.multi_reduction <add>, %192, %cst_87 [1] : vector<16x128xf32> to vector<16xf32>
      %194 = vector.shape_cast %193 : vector<16xf32> to vector<16x1xf32>
      %cst_88 = arith.constant 1.280000e+02 : f32
      %195 = vector.broadcast %cst_88 : f32 to vector<16x1xf32>
      %196 = arith.divf %194, %195 : vector<16x1xf32>
      %197 = vector.broadcast %189 : vector<16x1xf32> to vector<16x128xf32>
      %198 = arith.subf %183, %197 : vector<16x128xf32>
      %cst_89 = arith.constant 9.99999996E-13 : f32
      %199 = vector.broadcast %cst_89 : f32 to vector<16x1xf32>
      %200 = arith.addf %196, %199 : vector<16x1xf32>
      %201 = math.rsqrt %200 : vector<16x1xf32>
      %202 = vector.broadcast %201 : vector<16x1xf32> to vector<16x128xf32>
      %203 = arith.mulf %198, %202 : vector<16x128xf32>
      %204 = vector.broadcast %184 : vector<1x128xf32> to vector<16x128xf32>
      %205 = arith.mulf %203, %204 : vector<16x128xf32>
      %206 = vector.broadcast %185 : vector<1x128xf32> to vector<16x128xf32>
      %207 = arith.addf %205, %206 : vector<16x128xf32>
      %c0_90 = arith.constant 0 : index
      %c0_91 = arith.constant 0 : index
      %208 = vector.load %arg20[%c0_90, %c0_91] : memref<16x128xf32, #tpu.memory_space<vmem>>, vector<16x128xf32>
      tpu.vector_store %arg20[%c0_90, %c0_91], %207 {strides = array<i32>} : memref<16x128xf32, #tpu.memory_space<vmem>>, vector<16x128xf32>,
    } else {
    }
    %c0 = arith.constant 0 : index
    %c0_1 = arith.constant 0 : index
    %3 = vector.load %arg20[%c0, %c0_1] : memref<16x128xf32, #tpu.memory_space<vmem>>, vector<16x128xf32>
    %c0_2 = arith.constant 0 : index
    %c0_3 = arith.constant 0 : index
    %c0_4 = arith.constant 0 : index
    %4 = vector.load %arg5[%c0_2, %c0_3, %c0_4] : memref<1x128x384xf32, #tpu.memory_space<vmem>>, vector<1x128x384xf32>
    %5 = vector.shape_cast %4 : vector<1x128x384xf32> to vector<128x384xf32>
    %cst = arith.constant dense<0.000000e+00> : vector<16x384xf32>
    %6 = tpu.matmul %3, %5, %cst {dimension_numbers = #tpu.dot_dimension_numbers<[1], [0], [0], [1], [0, 0, 1, 1], [], []>} : vector<16x128xf32>, vector<128x384xf32>, vector<16x384xf32> -> vector<16x384xf32>
    %c0_5 = arith.constant 0 : index
    %c0_6 = arith.constant 0 : index
    %c0_7 = arith.constant 0 : index
    %7 = vector.load %arg6[%c0_5, %c0_6, %c0_7] : memref<1x1x384xf32, #tpu.memory_space<vmem>>, vector<1x1x384xf32>
    %8 = vector.shape_cast %7 : vector<1x1x384xf32> to vector<1x384xf32>
    %9 = vector.broadcast %8 : vector<1x384xf32> to vector<16x384xf32>
    %10 = arith.addf %6, %9 : vector<16x384xf32>
    %11 = vector.extract_strided_slice %10 {offsets = [0, 0], sizes = [16, 128], strides = [1, 1]} : vector<16x384xf32> to vector<16x128xf32>
    %12 = vector.extract_strided_slice %10 {offsets = [0, 128], sizes = [16, 128], strides = [1, 1]} : vector<16x384xf32> to vector<16x128xf32>
    %13 = vector.extract_strided_slice %10 {offsets = [0, 256], sizes = [16, 128], strides = [1, 1]} : vector<16x384xf32> to vector<16x128xf32>
    %c0_8 = arith.constant 0 : index
    %c0_9 = arith.constant 0 : index
    %14 = vector.load %arg4[%c0_8, %c0_9] : memref<2x8xf32, #tpu.memory_space<vmem>>, vector<2x8xf32>
    %15 = vector.extract_strided_slice %14 {offsets = [0, 0], sizes = [1, 8], strides = [1, 1]} : vector<2x8xf32> to vector<1x8xf32>
    %16 = vector.extract_strided_slice %11 {offsets = [0, 0], sizes = [8, 64], strides = [1, 1]} : vector<16x128xf32> to vector<8x64xf32>
    %17 = vector.extract_strided_slice %12 {offsets = [0, 0], sizes = [8, 64], strides = [1, 1]} : vector<16x128xf32> to vector<8x64xf32>
    %18 = vector.extract_strided_slice %13 {offsets = [0, 0], sizes = [8, 64], strides = [1, 1]} : vector<16x128xf32> to vector<8x64xf32>
    "tpu.trace_start"() <{level = 10 : i32, message = "qd,kd->qk"}> : () -> ()
    %cst_10 = arith.constant dense<0.000000e+00> : vector<8x8xf32>
    %19 = tpu.matmul %16, %17, %cst_10 {dimension_numbers = #tpu.dot_dimension_numbers<[1], [1], [0], [0], [0, 0, 1, 0], [], []>} : vector<8x64xf32>, vector<8x64xf32>, vector<8x8xf32> -> vector<8x8xf32>
    "tpu.trace_stop"() : () -> ()
    %cst_11 = arith.constant 1.250000e-01 : f32
    %20 = vector.broadcast %cst_11 : f32 to vector<8x8xf32>
    %21 = arith.mulf %19, %20 : vector<8x8xf32>
    %22 = vector.broadcast %15 : vector<1x8xf32> to vector<8x8xf32>
    %23 = arith.addf %21, %22 : vector<8x8xf32>
    %cst_12 = arith.constant dense<0xFF800000> : vector<8xf32>
    %24 = vector.multi_reduction <maximumf>, %23, %cst_12 [1] : vector<8x8xf32> to vector<8xf32>
    %25 = vector.shape_cast %24 : vector<8xf32> to vector<8x1xf32>
    %26 = vector.broadcast %25 : vector<8x1xf32> to vector<8x8xf32>
    %27 = arith.subf %23, %26 : vector<8x8xf32>
    %28 = math.exp %27 : vector<8x8xf32>
    %cst_13 = arith.constant dense<0.000000e+00> : vector<8xf32>
    %29 = vector.multi_reduction <add>, %28, %cst_13 [1] : vector<8x8xf32> to vector<8xf32>
    %30 = vector.shape_cast %29 : vector<8xf32> to vector<8x1xf32>
    %31 = tpu.reciprocal %30 {approx = true} : vector<8x1xf32> -> vector<8x1xf32>
    %32 = vector.broadcast %31 : vector<8x1xf32> to vector<8x8xf32>
    %33 = arith.mulf %28, %32 : vector<8x8xf32>
    %cst_14 = arith.constant dense<0.000000e+00> : vector<8x64xf32>
    %34 = tpu.matmul %33, %18, %cst_14 {dimension_numbers = #tpu.dot_dimension_numbers<[1], [0], [0], [1], [0, 0, 1, 1], [], []>} : vector<8x8xf32>, vector<8x64xf32>, vector<8x64xf32> -> vector<8x64xf32>
    %35 = vector.extract_strided_slice %11 {offsets = [0, 64], sizes = [8, 64], strides = [1, 1]} : vector<16x128xf32> to vector<8x64xf32>
    %36 = vector.extract_strided_slice %12 {offsets = [0, 64], sizes = [8, 64], strides = [1, 1]} : vector<16x128xf32> to vector<8x64xf32>
    %37 = vector.extract_strided_slice %13 {offsets = [0, 64], sizes = [8, 64], strides = [1, 1]} : vector<16x128xf32> to vector<8x64xf32>
    "tpu.trace_start"() <{level = 10 : i32, message = "qd,kd->qk"}> : () -> ()
    %cst_15 = arith.constant dense<0.000000e+00> : vector<8x8xf32>
    %38 = tpu.matmul %35, %36, %cst_15 {dimension_numbers = #tpu.dot_dimension_numbers<[1], [1], [0], [0], [0, 0, 1, 0], [], []>} : vector<8x64xf32>, vector<8x64xf32>, vector<8x8xf32> -> vector<8x8xf32>
    "tpu.trace_stop"() : () -> ()
    %cst_16 = arith.constant 1.250000e-01 : f32
    %39 = vector.broadcast %cst_16 : f32 to vector<8x8xf32>
    %40 = arith.mulf %38, %39 : vector<8x8xf32>
    %41 = vector.broadcast %15 : vector<1x8xf32> to vector<8x8xf32>
    %42 = arith.addf %40, %41 : vector<8x8xf32>
    %cst_17 = arith.constant dense<0xFF800000> : vector<8xf32>
    %43 = vector.multi_reduction <maximumf>, %42, %cst_17 [1] : vector<8x8xf32> to vector<8xf32>
    %44 = vector.shape_cast %43 : vector<8xf32> to vector<8x1xf32>
    %45 = vector.broadcast %44 : vector<8x1xf32> to vector<8x8xf32>
    %46 = arith.subf %42, %45 : vector<8x8xf32>
    %47 = math.exp %46 : vector<8x8xf32>
    %cst_18 = arith.constant dense<0.000000e+00> : vector<8xf32>
    %48 = vector.multi_reduction <add>, %47, %cst_18 [1] : vector<8x8xf32> to vector<8xf32>
    %49 = vector.shape_cast %48 : vector<8xf32> to vector<8x1xf32>
    %50 = tpu.reciprocal %49 {approx = true} : vector<8x1xf32> -> vector<8x1xf32>
    %51 = vector.broadcast %50 : vector<8x1xf32> to vector<8x8xf32>
    %52 = arith.mulf %47, %51 : vector<8x8xf32>
    %cst_19 = arith.constant dense<0.000000e+00> : vector<8x64xf32>
    %53 = tpu.matmul %52, %37, %cst_19 {dimension_numbers = #tpu.dot_dimension_numbers<[1], [0], [0], [1], [0, 0, 1, 1], [], []>} : vector<8x8xf32>, vector<8x64xf32>, vector<8x64xf32> -> vector<8x64xf32>
    %54 = tpu.concatenate %34, %53 in 1 : vector<8x64xf32>, vector<8x64xf32> -> vector<8x128xf32>
    %55 = vector.extract_strided_slice %14 {offsets = [1, 0], sizes = [1, 8], strides = [1, 1]} : vector<2x8xf32> to vector<1x8xf32>
    %56 = vector.extract_strided_slice %11 {offsets = [8, 0], sizes = [8, 64], strides = [1, 1]} : vector<16x128xf32> to vector<8x64xf32>
    %57 = vector.extract_strided_slice %12 {offsets = [8, 0], sizes = [8, 64], strides = [1, 1]} : vector<16x128xf32> to vector<8x64xf32>
    %58 = vector.extract_strided_slice %13 {offsets = [8, 0], sizes = [8, 64], strides = [1, 1]} : vector<16x128xf32> to vector<8x64xf32>
    "tpu.trace_start"() <{level = 10 : i32, message = "qd,kd->qk"}> : () -> ()
    %cst_20 = arith.constant dense<0.000000e+00> : vector<8x8xf32>
    %59 = tpu.matmul %56, %57, %cst_20 {dimension_numbers = #tpu.dot_dimension_numbers<[1], [1], [0], [0], [0, 0, 1, 0], [], []>} : vector<8x64xf32>, vector<8x64xf32>, vector<8x8xf32> -> vector<8x8xf32>
    "tpu.trace_stop"() : () -> ()
    %cst_21 = arith.constant 1.250000e-01 : f32
    %60 = vector.broadcast %cst_21 : f32 to vector<8x8xf32>
    %61 = arith.mulf %59, %60 : vector<8x8xf32>
    %62 = vector.broadcast %55 : vector<1x8xf32> to vector<8x8xf32>
    %63 = arith.addf %61, %62 : vector<8x8xf32>
    %cst_22 = arith.constant dense<0xFF800000> : vector<8xf32>
    %64 = vector.multi_reduction <maximumf>, %63, %cst_22 [1] : vector<8x8xf32> to vector<8xf32>
    %65 = vector.shape_cast %64 : vector<8xf32> to vector<8x1xf32>
    %66 = vector.broadcast %65 : vector<8x1xf32> to vector<8x8xf32>
    %67 = arith.subf %63, %66 : vector<8x8xf32>
    %68 = math.exp %67 : vector<8x8xf32>
    %cst_23 = arith.constant dense<0.000000e+00> : vector<8xf32>
    %69 = vector.multi_reduction <add>, %68, %cst_23 [1] : vector<8x8xf32> to vector<8xf32>
    %70 = vector.shape_cast %69 : vector<8xf32> to vector<8x1xf32>
    %71 = tpu.reciprocal %70 {approx = true} : vector<8x1xf32> -> vector<8x1xf32>
    %72 = vector.broadcast %71 : vector<8x1xf32> to vector<8x8xf32>
    %73 = arith.mulf %68, %72 : vector<8x8xf32>
    %cst_24 = arith.constant dense<0.000000e+00> : vector<8x64xf32>
    %74 = tpu.matmul %73, %58, %cst_24 {dimension_numbers = #tpu.dot_dimension_numbers<[1], [0], [0], [1], [0, 0, 1, 1], [], []>} : vector<8x8xf32>, vector<8x64xf32>, vector<8x64xf32> -> vector<8x64xf32>
    %75 = vector.extract_strided_slice %11 {offsets = [8, 64], sizes = [8, 64], strides = [1, 1]} : vector<16x128xf32> to vector<8x64xf32>
    %76 = vector.extract_strided_slice %12 {offsets = [8, 64], sizes = [8, 64], strides = [1, 1]} : vector<16x128xf32> to vector<8x64xf32>
    %77 = vector.extract_strided_slice %13 {offsets = [8, 64], sizes = [8, 64], strides = [1, 1]} : vector<16x128xf32> to vector<8x64xf32>
    "tpu.trace_start"() <{level = 10 : i32, message = "qd,kd->qk"}> : () -> ()
    %cst_25 = arith.constant dense<0.000000e+00> : vector<8x8xf32>
    %78 = tpu.matmul %75, %76, %cst_25 {dimension_numbers = #tpu.dot_dimension_numbers<[1], [1], [0], [0], [0, 0, 1, 0], [], []>} : vector<8x64xf32>, vector<8x64xf32>, vector<8x8xf32> -> vector<8x8xf32>
    "tpu.trace_stop"() : () -> ()
    %cst_26 = arith.constant 1.250000e-01 : f32
    %79 = vector.broadcast %cst_26 : f32 to vector<8x8xf32>
    %80 = arith.mulf %78, %79 : vector<8x8xf32>
    %81 = vector.broadcast %55 : vector<1x8xf32> to vector<8x8xf32>
    %82 = arith.addf %80, %81 : vector<8x8xf32>
    %cst_27 = arith.constant dense<0xFF800000> : vector<8xf32>
    %83 = vector.multi_reduction <maximumf>, %82, %cst_27 [1] : vector<8x8xf32> to vector<8xf32>
    %84 = vector.shape_cast %83 : vector<8xf32> to vector<8x1xf32>
    %85 = vector.broadcast %84 : vector<8x1xf32> to vector<8x8xf32>
    %86 = arith.subf %82, %85 : vector<8x8xf32>
    %87 = math.exp %86 : vector<8x8xf32>
    %cst_28 = arith.constant dense<0.000000e+00> : vector<8xf32>
    %88 = vector.multi_reduction <add>, %87, %cst_28 [1] : vector<8x8xf32> to vector<8xf32>
    %89 = vector.shape_cast %88 : vector<8xf32> to vector<8x1xf32>
    %90 = tpu.reciprocal %89 {approx = true} : vector<8x1xf32> -> vector<8x1xf32>
    %91 = vector.broadcast %90 : vector<8x1xf32> to vector<8x8xf32>
    %92 = arith.mulf %87, %91 : vector<8x8xf32>
    %cst_29 = arith.constant dense<0.000000e+00> : vector<8x64xf32>
    %93 = tpu.matmul %92, %77, %cst_29 {dimension_numbers = #tpu.dot_dimension_numbers<[1], [0], [0], [1], [0, 0, 1, 1], [], []>} : vector<8x8xf32>, vector<8x64xf32>, vector<8x64xf32> -> vector<8x64xf32>
    %94 = tpu.concatenate %74, %93 in 1 : vector<8x64xf32>, vector<8x64xf32> -> vector<8x128xf32>
    %95 = tpu.concatenate %54, %94 in 0 : vector<8x128xf32>, vector<8x128xf32> -> vector<16x128xf32>
    %c0_30 = arith.constant 0 : index
    %c0_31 = arith.constant 0 : index
    %c0_32 = arith.constant 0 : index
    %96 = vector.load %arg7[%c0_30, %c0_31, %c0_32] : memref<1x128x128xf32, #tpu.memory_space<vmem>>, vector<1x128x128xf32>
    %97 = vector.shape_cast %96 : vector<1x128x128xf32> to vector<128x128xf32>
    %cst_33 = arith.constant dense<0.000000e+00> : vector<16x128xf32>
    %98 = tpu.matmul %95, %97, %cst_33 {dimension_numbers = #tpu.dot_dimension_numbers<[1], [0], [0], [1], [0, 0, 1, 1], [], []>} : vector<16x128xf32>, vector<128x128xf32>, vector<16x128xf32> -> vector<16x128xf32>
    %c0_34 = arith.constant 0 : index
    %c0_35 = arith.constant 0 : index
    %c0_36 = arith.constant 0 : index
    %99 = vector.load %arg8[%c0_34, %c0_35, %c0_36] : memref<1x1x128xf32, #tpu.memory_space<vmem>>, vector<1x1x128xf32>
    %100 = vector.shape_cast %99 : vector<1x1x128xf32> to vector<1x128xf32>
    %101 = vector.broadcast %100 : vector<1x128xf32> to vector<16x128xf32>
    %102 = arith.addf %98, %101 : vector<16x128xf32>
    %103 = arith.addf %102, %3 : vector<16x128xf32>
    %c0_37 = arith.constant 0 : index
    %c0_38 = arith.constant 0 : index
    %c0_39 = arith.constant 0 : index
    %104 = vector.load %arg9[%c0_37, %c0_38, %c0_39] : memref<1x1x128xf32, #tpu.memory_space<vmem>>, vector<1x1x128xf32>
    %105 = vector.shape_cast %104 : vector<1x1x128xf32> to vector<1x128xf32>
    %c0_40 = arith.constant 0 : index
    %c0_41 = arith.constant 0 : index
    %c0_42 = arith.constant 0 : index
    %106 = vector.load %arg10[%c0_40, %c0_41, %c0_42] : memref<1x1x128xf32, #tpu.memory_space<vmem>>, vector<1x1x128xf32>
    %107 = vector.shape_cast %106 : vector<1x1x128xf32> to vector<1x128xf32>
    %cst_43 = arith.constant dense<0.000000e+00> : vector<16xf32>
    %108 = vector.multi_reduction <add>, %103, %cst_43 [1] : vector<16x128xf32> to vector<16xf32>
    %109 = vector.shape_cast %108 : vector<16xf32> to vector<16x1xf32>
    %cst_44 = arith.constant 1.280000e+02 : f32
    %110 = vector.broadcast %cst_44 : f32 to vector<16x1xf32>
    %111 = arith.divf %109, %110 : vector<16x1xf32>
    %112 = vector.broadcast %111 : vector<16x1xf32> to vector<16x128xf32>
    %113 = arith.subf %103, %112 : vector<16x128xf32>
    %114 = arith.mulf %113, %113 : vector<16x128xf32>
    %cst_45 = arith.constant dense<0.000000e+00> : vector<16xf32>
    %115 = vector.multi_reduction <add>, %114, %cst_45 [1] : vector<16x128xf32> to vector<16xf32>
    %116 = vector.shape_cast %115 : vector<16xf32> to vector<16x1xf32>
    %cst_46 = arith.constant 1.280000e+02 : f32
    %117 = vector.broadcast %cst_46 : f32 to vector<16x1xf32>
    %118 = arith.divf %116, %117 : vector<16x1xf32>
    %119 = vector.broadcast %111 : vector<16x1xf32> to vector<16x128xf32>
    %120 = arith.subf %103, %119 : vector<16x128xf32>
    %cst_47 = arith.constant 9.99999996E-13 : f32
    %121 = vector.broadcast %cst_47 : f32 to vector<16x1xf32>
    %122 = arith.addf %118, %121 : vector<16x1xf32>
    %123 = math.rsqrt %122 : vector<16x1xf32>
    %124 = vector.broadcast %123 : vector<16x1xf32> to vector<16x128xf32>
    %125 = arith.mulf %120, %124 : vector<16x128xf32>
    %126 = vector.broadcast %105 : vector<1x128xf32> to vector<16x128xf32>
    %127 = arith.mulf %125, %126 : vector<16x128xf32>
    %128 = vector.broadcast %107 : vector<1x128xf32> to vector<16x128xf32>
    %129 = arith.addf %127, %128 : vector<16x128xf32>
    %c0_48 = arith.constant 0 : index
    %c0_49 = arith.constant 0 : index
    %c0_50 = arith.constant 0 : index
    %130 = vector.load %arg11[%c0_48, %c0_49, %c0_50] : memref<1x128x256xf32, #tpu.memory_space<vmem>>, vector<1x128x256xf32>
    %131 = vector.shape_cast %130 : vector<1x128x256xf32> to vector<128x256xf32>
    %cst_51 = arith.constant dense<0.000000e+00> : vector<16x256xf32>
    %132 = tpu.matmul %129, %131, %cst_51 {dimension_numbers = #tpu.dot_dimension_numbers<[1], [0], [0], [1], [0, 0, 1, 1], [], []>} : vector<16x128xf32>, vector<128x256xf32>, vector<16x256xf32> -> vector<16x256xf32>
    %c0_52 = arith.constant 0 : index
    %c0_53 = arith.constant 0 : index
    %c0_54 = arith.constant 0 : index
    %133 = vector.load %arg12[%c0_52, %c0_53, %c0_54] : memref<1x1x256xf32, #tpu.memory_space<vmem>>, vector<1x1x256xf32>
    %134 = vector.shape_cast %133 : vector<1x1x256xf32> to vector<1x256xf32>
    %135 = vector.broadcast %134 : vector<1x256xf32> to vector<16x256xf32>
    %136 = arith.addf %132, %135 : vector<16x256xf32>
    %cst_55 = arith.constant 5.000000e-01 : f32
    %137 = vector.broadcast %cst_55 : f32 to vector<16x256xf32>
    %138 = arith.mulf %137, %136 : vector<16x256xf32>
    %cst_56 = arith.constant 0.707106769 : f32
    %139 = vector.broadcast %cst_56 : f32 to vector<16x256xf32>
    %140 = arith.mulf %136, %139 : vector<16x256xf32>
    %141 = math.erf %140 : vector<16x256xf32>
    %cst_57 = arith.constant 1.000000e+00 : f32
    %142 = vector.broadcast %cst_57 : f32 to vector<16x256xf32>
    %143 = arith.addf %142, %141 : vector<16x256xf32>
    %144 = arith.mulf %138, %143 : vector<16x256xf32>
    %c0_58 = arith.constant 0 : index
    %c0_59 = arith.constant 0 : index
    %c0_60 = arith.constant 0 : index
    %145 = vector.load %arg13[%c0_58, %c0_59, %c0_60] : memref<1x256x128xf32, #tpu.memory_space<vmem>>, vector<1x256x128xf32>
    %146 = vector.shape_cast %145 : vector<1x256x128xf32> to vector<256x128xf32>
    %cst_61 = arith.constant dense<0.000000e+00> : vector<16x128xf32>
    %147 = tpu.matmul %144, %146, %cst_61 {dimension_numbers = #tpu.dot_dimension_numbers<[1], [0], [0], [1], [0, 0, 1, 1], [], []>} : vector<16x256xf32>, vector<256x128xf32>, vector<16x128xf32> -> vector<16x128xf32>
    %c0_62 = arith.constant 0 : index
    %c0_63 = arith.constant 0 : index
    %c0_64 = arith.constant 0 : index
    %148 = vector.load %arg14[%c0_62, %c0_63, %c0_64] : memref<1x1x128xf32, #tpu.memory_space<vmem>>, vector<1x1x128xf32>
    %149 = vector.shape_cast %148 : vector<1x1x128xf32> to vector<1x128xf32>
    %150 = vector.broadcast %149 : vector<1x128xf32> to vector<16x128xf32>
    %151 = arith.addf %147, %150 : vector<16x128xf32>
    %152 = arith.addf %151, %129 : vector<16x128xf32>
    %c0_65 = arith.constant 0 : index
    %c0_66 = arith.constant 0 : index
    %c0_67 = arith.constant 0 : index
    %153 = vector.load %arg15[%c0_65, %c0_66, %c0_67] : memref<1x1x128xf32, #tpu.memory_space<vmem>>, vector<1x1x128xf32>
    %154 = vector.shape_cast %153 : vector<1x1x128xf32> to vector<1x128xf32>
    %c0_68 = arith.constant 0 : index
    %c0_69 = arith.constant 0 : index
    %c0_70 = arith.constant 0 : index
    %155 = vector.load %arg16[%c0_68, %c0_69, %c0_70] : memref<1x1x128xf32, #tpu.memory_space<vmem>>, vector<1x1x128xf32>
    %156 = vector.shape_cast %155 : vector<1x1x128xf32> to vector<1x128xf32>
    %cst_71 = arith.constant dense<0.000000e+00> : vector<16xf32>
    %157 = vector.multi_reduction <add>, %152, %cst_71 [1] : vector<16x128xf32> to vector<16xf32>
    %158 = vector.shape_cast %157 : vector<16xf32> to vector<16x1xf32>
    %cst_72 = arith.constant 1.280000e+02 : f32
    %159 = vector.broadcast %cst_72 : f32 to vector<16x1xf32>
    %160 = arith.divf %158, %159 : vector<16x1xf32>
    %161 = vector.broadcast %160 : vector<16x1xf32> to vector<16x128xf32>
    %162 = arith.subf %152, %161 : vector<16x128xf32>
    %163 = arith.mulf %162, %162 : vector<16x128xf32>
    %cst_73 = arith.constant dense<0.000000e+00> : vector<16xf32>
    %164 = vector.multi_reduction <add>, %163, %cst_73 [1] : vector<16x128xf32> to vector<16xf32>
    %165 = vector.shape_cast %164 : vector<16xf32> to vector<16x1xf32>
    %cst_74 = arith.constant 1.280000e+02 : f32
    %166 = vector.broadcast %cst_74 : f32 to vector<16x1xf32>
    %167 = arith.divf %165, %166 : vector<16x1xf32>
    %168 = vector.broadcast %160 : vector<16x1xf32> to vector<16x128xf32>
    %169 = arith.subf %152, %168 : vector<16x128xf32>
    %cst_75 = arith.constant 9.99999996E-13 : f32
    %170 = vector.broadcast %cst_75 : f32 to vector<16x1xf32>
    %171 = arith.addf %167, %170 : vector<16x1xf32>
    %172 = math.rsqrt %171 : vector<16x1xf32>
    %173 = vector.broadcast %172 : vector<16x1xf32> to vector<16x128xf32>
    %174 = arith.mulf %169, %173 : vector<16x128xf32>
    %175 = vector.broadcast %154 : vector<1x128xf32> to vector<16x128xf32>
    %176 = arith.mulf %174, %175 : vector<16x128xf32>
    %177 = vector.broadcast %156 : vector<1x128xf32> to vector<16x128xf32>
    %178 = arith.addf %176, %177 : vector<16x128xf32>
    %c0_76 = arith.constant 0 : index
    %c0_77 = arith.constant 0 : index
    %179 = vector.load %arg20[%c0_76, %c0_77] : memref<16x128xf32, #tpu.memory_space<vmem>>, vector<16x128xf32>
    tpu.vector_store %arg20[%c0_76, %c0_77], %178 {strides = array<i32>} : memref<16x128xf32, #tpu.memory_space<vmem>>, vector<16x128xf32>,
    %c1_i32 = arith.constant 1 : i32
    %180 = arith.cmpi eq, %arg0, %c1_i32 : i32
    %181 = arith.extui %180 : i1 to i32
    %c0_i32_78 = arith.constant 0 : i32
    %182 = arith.cmpi ne, %181, %c0_i32_78 : i32
    scf.if %182 {
      %183 = vector.extract_strided_slice %178 {offsets = [0, 0], sizes = [1, 128], strides = [1, 1]} : vector<16x128xf32> to vector<1x128xf32>
      %184 = vector.extract_strided_slice %178 {offsets = [8, 0], sizes = [1, 128], strides = [1, 1]} : vector<16x128xf32> to vector<1x128xf32>
      %185 = tpu.concatenate %183, %184 in 0 : vector<1x128xf32>, vector<1x128xf32> -> vector<2x128xf32>
      %c0_79 = arith.constant 0 : index
      %c0_80 = arith.constant 0 : index
      %186 = vector.load %arg17[%c0_79, %c0_80] : memref<128x128xf32, #tpu.memory_space<vmem>>, vector<128x128xf32>
      %cst_81 = arith.constant dense<0.000000e+00> : vector<2x128xf32>
      %187 = tpu.matmul %185, %186, %cst_81 {dimension_numbers = #tpu.dot_dimension_numbers<[1], [0], [0], [1], [0, 0, 1, 1], [], []>} : vector<2x128xf32>, vector<128x128xf32>, vector<2x128xf32> -> vector<2x128xf32>
      %c0_82 = arith.constant 0 : index
      %c0_83 = arith.constant 0 : index
      %188 = vector.load %arg18[%c0_82, %c0_83] : memref<1x128xf32, #tpu.memory_space<vmem>>, vector<1x128xf32>
      %189 = vector.broadcast %188 : vector<1x128xf32> to vector<2x128xf32>
      %190 = arith.addf %187, %189 : vector<2x128xf32>
      %c0_84 = arith.constant 0 : index
      %c0_85 = arith.constant 0 : index
      %191 = vector.load %arg19[%c0_84, %c0_85] : memref<2x128xf32, #tpu.memory_space<vmem>>, vector<2x128xf32>
      tpu.vector_store %arg19[%c0_84, %c0_85], %190 {strides = array<i32>} : memref<2x128xf32, #tpu.memory_space<vmem>>, vector<2x128xf32>,
    } else {
    }
    return
  }
  func.func @transform_0(%arg0: i32) -> (i32, i32) {
    %c0_i32 = arith.constant 0 : i32
    %c0_i32_0 = arith.constant 0 : i32
    %c0_i32_1 = arith.constant 0 : i32
    return %c0_i32, %c0_i32_0 : i32, i32
  }
  func.func @transform_1(%arg0: i32) -> (i32, i32) {
    %c0_i32 = arith.constant 0 : i32
    %c0_i32_0 = arith.constant 0 : i32
    %c0_i32_1 = arith.constant 0 : i32
    return %c0_i32, %c0_i32_0 : i32, i32
  }
  func.func @transform_2(%arg0: i32) -> (i32, i32) {
    %c0_i32 = arith.constant 0 : i32
    %c0_i32_0 = arith.constant 0 : i32
    %c0_i32_1 = arith.constant 0 : i32
    return %c0_i32, %c0_i32_0 : i32, i32
  }
  func.func @transform_3(%arg0: i32) -> (i32, i32) {
    %c0_i32 = arith.constant 0 : i32
    %c0_i32_0 = arith.constant 0 : i32
    %c0_i32_1 = arith.constant 0 : i32
    return %c0_i32, %c0_i32_0 : i32, i32
  }
  func.func @transform_4(%arg0: i32) -> (i32, i32, i32) {
    %c0_i32 = arith.constant 0 : i32
    %c0_i32_0 = arith.constant 0 : i32
    %c0_i32_1 = arith.constant 0 : i32
    return %arg0, %c0_i32, %c0_i32_0 : i32, i32, i32
  }
  func.func @transform_5(%arg0: i32) -> (i32, i32, i32) {
    %c0_i32 = arith.constant 0 : i32
    %c0_i32_0 = arith.constant 0 : i32
    %c0_i32_1 = arith.constant 0 : i32
    return %arg0, %c0_i32, %c0_i32_0 : i32, i32, i32
  }
  func.func @transform_6(%arg0: i32) -> (i32, i32, i32) {
    %c0_i32 = arith.constant 0 : i32
    %c0_i32_0 = arith.constant 0 : i32
    %c0_i32_1 = arith.constant 0 : i32
    return %arg0, %c0_i32, %c0_i32_0 : i32, i32, i32
  }
  func.func @transform_7(%arg0: i32) -> (i32, i32, i32) {
    %c0_i32 = arith.constant 0 : i32
    %c0_i32_0 = arith.constant 0 : i32
    %c0_i32_1 = arith.constant 0 : i32
    return %arg0, %c0_i32, %c0_i32_0 : i32, i32, i32
  }
  func.func @transform_8(%arg0: i32) -> (i32, i32, i32) {
    %c0_i32 = arith.constant 0 : i32
    %c0_i32_0 = arith.constant 0 : i32
    %c0_i32_1 = arith.constant 0 : i32
    return %arg0, %c0_i32, %c0_i32_0 : i32, i32, i32
  }
  func.func @transform_9(%arg0: i32) -> (i32, i32, i32) {
    %c0_i32 = arith.constant 0 : i32
    %c0_i32_0 = arith.constant 0 : i32
    %c0_i32_1 = arith.constant 0 : i32
    return %arg0, %c0_i32, %c0_i32_0 : i32, i32, i32
  }
  func.func @transform_10(%arg0: i32) -> (i32, i32, i32) {
    %c0_i32 = arith.constant 0 : i32
    %c0_i32_0 = arith.constant 0 : i32
    %c0_i32_1 = arith.constant 0 : i32
    return %arg0, %c0_i32, %c0_i32_0 : i32, i32, i32
  }
  func.func @transform_11(%arg0: i32) -> (i32, i32, i32) {
    %c0_i32 = arith.constant 0 : i32
    %c0_i32_0 = arith.constant 0 : i32
    %c0_i32_1 = arith.constant 0 : i32
    return %arg0, %c0_i32, %c0_i32_0 : i32, i32, i32
  }
  func.func @transform_12(%arg0: i32) -> (i32, i32, i32) {
    %c0_i32 = arith.constant 0 : i32
    %c0_i32_0 = arith.constant 0 : i32
    %c0_i32_1 = arith.constant 0 : i32
    return %arg0, %c0_i32, %c0_i32_0 : i32, i32, i32
  }
  func.func @transform_13(%arg0: i32) -> (i32, i32, i32) {
    %c0_i32 = arith.constant 0 : i32
    %c0_i32_0 = arith.constant 0 : i32
    %c0_i32_1 = arith.constant 0 : i32
    return %arg0, %c0_i32, %c0_i32_0 : i32, i32, i32
  }
  func.func @transform_14(%arg0: i32) -> (i32, i32, i32) {
    %c0_i32 = arith.constant 0 : i32
    %c0_i32_0 = arith.constant 0 : i32
    %c0_i32_1 = arith.constant 0 : i32
    return %arg0, %c0_i32, %c0_i32_0 : i32, i32, i32
  }
  func.func @transform_15(%arg0: i32) -> (i32, i32, i32) {
    %c0_i32 = arith.constant 0 : i32
    %c0_i32_0 = arith.constant 0 : i32
    %c0_i32_1 = arith.constant 0 : i32
    return %arg0, %c0_i32, %c0_i32_0 : i32, i32, i32
  }
  func.func @transform_16(%arg0: i32) -> (i32, i32) {
    %c0_i32 = arith.constant 0 : i32
    %c0_i32_0 = arith.constant 0 : i32
    %c0_i32_1 = arith.constant 0 : i32
    return %c0_i32, %c0_i32_0 : i32, i32
  }
  func.func @transform_17(%arg0: i32) -> (i32, i32) {
    %c0_i32 = arith.constant 0 : i32
    %c0_i32_0 = arith.constant 0 : i32
    %c0_i32_1 = arith.constant 0 : i32
    return %c0_i32, %c0_i32_0 : i32, i32
  }
  func.func @transform_18(%arg0: i32) -> (i32, i32) {
    %c0_i32 = arith.constant 0 : i32
    %c0_i32_0 = arith.constant 0 : i32
    %c0_i32_1 = arith.constant 0 : i32
    return %c0_i32, %c0_i32_0 : i32, i32
  }
}

</mosaic_0001>

<llo_original>
// kernel: bert_base_uncased_forward.1
$region0: #{bert_base_uncased_forward.1}
  #allocation0 [shape = 'u32[]', space=smem, size = 0x4, offset = 0x4, fixed_abs, tag = 'smem constant byte address 0x4 - core index']
  #allocation1 [shape = 'u32[144,128]{1,0:T(1,128)}', space=vmem, size = 0x12000, scoped, tag = 'internal scratch']
  #allocation2 [shape = 'f32[16,128]{1,0:T(8,128)}', space=vmem, size = 0x2000, scoped, tag = 'scratch operand']
  %s0 = inlined_call_operand.vmem [shape: f32[16,128], index: 0, kind: input, shape index: {}]
  %s1 = inlined_call_operand.vmem [shape: f32[1,128], index: 1, kind: input, shape index: {}]
  %s2 = inlined_call_operand.vmem [shape: f32[1,128], index: 2, kind: input, shape index: {}]
  %s3 = inlined_call_operand.vmem [shape: f32[2,8], index: 3, kind: input, shape index: {}]
  %s4 = inlined_call_operand.hbm [shape: f32[2,128,384], index: 4, kind: input, shape index: {}]
  %s5 = inlined_call_operand.vmem [shape: f32[2,1,384], index: 5, kind: input, shape index: {}]
  %s6 = inlined_call_operand.vmem [shape: f32[2,128,128], index: 6, kind: input, shape index: {}]
  %s7 = inlined_call_operand.vmem [shape: f32[2,1,128], index: 7, kind: input, shape index: {}]
  %s8 = inlined_call_operand.vmem [shape: f32[2,1,128], index: 8, kind: input, shape index: {}]
  %s9 = inlined_call_operand.vmem [shape: f32[2,1,128], index: 9, kind: input, shape index: {}]
  %s10 = inlined_call_operand.vmem [shape: f32[2,128,256], index: 10, kind: input, shape index: {}]
  %s11 = inlined_call_operand.vmem [shape: f32[2,1,256], index: 11, kind: input, shape index: {}]
  %s12 = inlined_call_operand.hbm [shape: f32[2,256,128], index: 12, kind: input, shape index: {}]
  %s13 = inlined_call_operand.vmem [shape: f32[2,1,128], index: 13, kind: input, shape index: {}]
  %s14 = inlined_call_operand.vmem [shape: f32[2,1,128], index: 14, kind: input, shape index: {}]
  %s15 = inlined_call_operand.vmem [shape: f32[2,1,128], index: 15, kind: input, shape index: {}]
  %s16 = inlined_call_operand.vmem [shape: f32[128,128], index: 16, kind: input, shape index: {}]
  %s17 = inlined_call_operand.vmem [shape: f32[1,128], index: 17, kind: input, shape index: {}]
  %s18 = inlined_call_operand.vmem [shape: f32[2,128], index: 18, kind: output, shape index: {}]
  %s19 = sld [smem:[#allocation0]]
  $region121: #{bert_base_uncased_forward.1} parent=0
    _
  %s21 = ssub.s32 1, %s19
  %s22 = scalar_select 0, %s21, %s19
  $region1: #{bert_base_uncased_forward.1} parent=0
    #allocation3 [shape = 'u8[393216]{0}', space=vmem, size = 0x60000, scoped, tag = 'input window, operand 4']
    #allocation4 [shape = 's32[2]{0}', space=sflag, size = 0x8, scoped, tag = 'scoped memory for bert_base_uncased_forward.1']
    #allocation5 [shape = 'u8[262144]{0}', space=vmem, size = 0x40000, scoped, tag = 'input window, operand 12']
    #allocation6 [shape = 's32[2]{0}', space=sflag, size = 0x8, scoped, tag = 'scoped memory for bert_base_uncased_forward.1']
    %23 = vsyncpa [#allocation4], 0
    %s24 = scalar_lea.sflag [#allocation4], 1
    %25 = vsyncpa %s24, 0
    %26 = vsyncpa [#allocation6], 0
    %s27 = scalar_lea.sflag [#allocation6], 1
    %28 = vsyncpa %s27, 0
    loop: start=0, step=1, limit=4
    $region2: #{bert_base_uncased_forward.1} parent=1 // loop_pre_header
      _
    $region3: #{bert_base_uncased_forward.1} parent=1 // loop_header
      %s30 = sphi 0, %s34
      %p31 = scmp.ge.s32.totalorder %s30, 4
      %s38 = sphi 0, %s38
      %s40 = sphi 0, %s38
      %s41 = sphi 0, %s40
      %s55 = sphi 0, %s41
      %s59 = sphi 0, %s59
      %s61 = sphi 0, %s59
      %s62 = sphi 0, %s61
      %s76 = sphi 0, %s62
      %s80 = sphi 0, %s80
      %s82 = sphi 0, %s80
      %s83 = sphi 0, %s82
      %s97 = sphi 0, %s83
      %s101 = sphi 0, %s101
      %s103 = sphi 0, %s101
      %s104 = sphi 0, %s103
      %s118 = sphi 0, %s104
      %s124 = sphi 0, %s126
      %s127 = sphi 0, %s124
      %s128 = sphi 0, %s127
      %s144 = sphi 0, %s128
      %s150 = sphi 0, %s152
      %s153 = sphi 0, %s150
      %s154 = sphi 0, %s153
      %s170 = sphi 0, %s154
      %s176 = sphi 0, %s178
      %s179 = sphi 0, %s176
      %s180 = sphi 0, %s179
      %s196 = sphi 0, %s180
      %s202 = sphi 0, %s204
      %s205 = sphi 0, %s202
      %s206 = sphi 0, %s205
      %s222 = sphi 0, %s206
      %s228 = sphi 0, %s230
      %s231 = sphi 0, %s228
      %s232 = sphi 0, %s231
      %s248 = sphi 0, %s232
      %s254 = sphi 0, %s256
      %s257 = sphi 0, %s254
      %s258 = sphi 0, %s257
      %s274 = sphi 0, %s258
      %s280 = sphi 0, %s282
      %s283 = sphi 0, %s280
      %s284 = sphi 0, %s283
      %s300 = sphi 0, %s284
      %s306 = sphi 0, %s308
      %s309 = sphi 0, %s306
      %s310 = sphi 0, %s309
      %s326 = sphi 0, %s310
      %s332 = sphi 0, %s334
      %s335 = sphi 0, %s332
      %s336 = sphi 0, %s335
      %s352 = sphi 0, %s336
      %s358 = sphi 0, %s360
      %s361 = sphi 0, %s358
      %s362 = sphi 0, %s361
      %s378 = sphi 0, %s362
      %s384 = sphi 0, %s386
      %s387 = sphi 0, %s384
      %s388 = sphi 0, %s387
      %s404 = sphi 0, %s388
      %s410 = sphi 0, %s412
      %s413 = sphi 0, %s410
      %s414 = sphi 0, %s413
      %s430 = sphi 0, %s414
      %s434 = sphi 0, %s434
      %s436 = sphi 0, %s434
      %s437 = sphi 0, %s436
      %s451 = sphi 0, %s437
      %s455 = sphi 0, %s455
      %s457 = sphi 0, %s455
      %s458 = sphi 0, %s457
      %s472 = sphi 0, %s458
      %s476 = sphi 0, %s476
      %s478 = sphi 0, %s476
      %s479 = sphi 0, %s478
      %s493 = sphi 0, %s479
    $region4: #{bert_base_uncased_forward.1} parent=1 // loop_header_branch
      %33 = sbr.rel (%p31) target = $region8
    $region5: #{bert_base_uncased_forward.1} parent=1 // loop_body
      %s35 = ssub.s32 %s30, 1
      %s36 = ssub.s32 %s30, 2
      %s37 = sadd.s32 %s30, 1
      %s39 = sadd.s32 %s38, 1
      %p42 = scmp.eq.s32.totalorder %s30, 1
      %p43 = scmp.ne.s32.totalorder %s38, %s40
      %p44 = scmp.eq.s32.totalorder %s30, 0
      %p45 = por %p43, %p44
      %p46 = scmp.ne.s32.totalorder %s38, %s40
      %p47 = scmp.eq.s32.totalorder %s35, 1
      %p48 = por %p46, %p47
      %p49 = scmp.ne.s32.totalorder %s40, %s41
      %p50 = scmp.eq.s32.totalorder %s35, 0
      %p51 = por %p49, %p50
      %p52 = scmp.ne.s32.totalorder %s40, %s41
      %p53 = scmp.eq.s32.totalorder %s36, 1
      %p54 = por %p52, %p53
      %p56 = scmp.ne.s32.totalorder %s41, %s55
      %p57 = scmp.eq.s32.totalorder %s36, 0
      %p58 = por %p56, %p57
      %s60 = sadd.s32 %s59, 1
      %p63 = scmp.eq.s32.totalorder %s30, 1
      %p64 = scmp.ne.s32.totalorder %s59, %s61
      %p65 = scmp.eq.s32.totalorder %s30, 0
      %p66 = por %p64, %p65
      %p67 = scmp.ne.s32.totalorder %s59, %s61
      %p68 = scmp.eq.s32.totalorder %s35, 1
      %p69 = por %p67, %p68
      %p70 = scmp.ne.s32.totalorder %s61, %s62
      %p71 = scmp.eq.s32.totalorder %s35, 0
      %p72 = por %p70, %p71
      %p73 = scmp.ne.s32.totalorder %s61, %s62
      %p74 = scmp.eq.s32.totalorder %s36, 1
      %p75 = por %p73, %p74
      %p77 = scmp.ne.s32.totalorder %s62, %s76
      %p78 = scmp.eq.s32.totalorder %s36, 0
      %p79 = por %p77, %p78
      %s81 = sadd.s32 %s80, 1
      %p84 = scmp.eq.s32.totalorder %s30, 1
      %p85 = scmp.ne.s32.totalorder %s80, %s82
      %p86 = scmp.eq.s32.totalorder %s30, 0
      %p87 = por %p85, %p86
      %p88 = scmp.ne.s32.totalorder %s80, %s82
      %p89 = scmp.eq.s32.totalorder %s35, 1
      %p90 = por %p88, %p89
      %p91 = scmp.ne.s32.totalorder %s82, %s83
      %p92 = scmp.eq.s32.totalorder %s35, 0
      %p93 = por %p91, %p92
      %p94 = scmp.ne.s32.totalorder %s82, %s83
      %p95 = scmp.eq.s32.totalorder %s36, 1
      %p96 = por %p94, %p95
      %p98 = scmp.ne.s32.totalorder %s83, %s97
      %p99 = scmp.eq.s32.totalorder %s36, 0
      %p100 = por %p98, %p99
      %s102 = sadd.s32 %s101, 1
      %p105 = scmp.eq.s32.totalorder %s30, 1
      %p106 = scmp.ne.s32.totalorder %s101, %s103
      %p107 = scmp.eq.s32.totalorder %s30, 0
      %p108 = por %p106, %p107
      %p109 = scmp.ne.s32.totalorder %s101, %s103
      %p110 = scmp.eq.s32.totalorder %s35, 1
      %p111 = por %p109, %p110
      %p112 = scmp.ne.s32.totalorder %s103, %s104
      %p113 = scmp.eq.s32.totalorder %s35, 0
      %p114 = por %p112, %p113
      %p115 = scmp.ne.s32.totalorder %s103, %s104
      %p116 = scmp.eq.s32.totalorder %s36, 1
      %p117 = por %p115, %p116
      %p119 = scmp.ne.s32.totalorder %s104, %s118
      %p120 = scmp.eq.s32.totalorder %s36, 0
      %p121 = por %p119, %p120
      %s122 = ssub.s32 %s30, %s37
      %p123 = scmp.eq.s32.totalorder %s122, 0
      %s125 = sadd.s32 %s124, 1
      %s126 = scalar_select %p123, %s124, %s125
      %p129 = pneg %p123
      %p130 = scmp.eq.s32.totalorder %s30, 1
      %p131 = por %p129, %p130
      %p132 = scmp.ne.s32.totalorder %s124, %s127
      %p133 = scmp.eq.s32.totalorder %s30, 0
      %p134 = por %p132, %p133
      %p135 = scmp.ne.s32.totalorder %s124, %s127
      %p136 = scmp.eq.s32.totalorder %s35, 1
      %p137 = por %p135, %p136
      %p138 = scmp.ne.s32.totalorder %s127, %s128
      %p139 = scmp.eq.s32.totalorder %s35, 0
      %p140 = por %p138, %p139
      %p141 = scmp.ne.s32.totalorder %s127, %s128
      %p142 = scmp.eq.s32.totalorder %s36, 1
      %p143 = por %p141, %p142
      %p145 = scmp.ne.s32.totalorder %s128, %s144
      %p146 = scmp.eq.s32.totalorder %s36, 0
      %p147 = por %p145, %p146
      %s148 = ssub.s32 %s30, %s37
      %p149 = scmp.eq.s32.totalorder %s148, 0
      %s151 = sadd.s32 %s150, 1
      %s152 = scalar_select %p149, %s150, %s151
      %p155 = pneg %p149
      %p156 = scmp.eq.s32.totalorder %s30, 1
      %p157 = por %p155, %p156
      %p158 = scmp.ne.s32.totalorder %s150, %s153
      %p159 = scmp.eq.s32.totalorder %s30, 0
      %p160 = por %p158, %p159
      %p161 = scmp.ne.s32.totalorder %s150, %s153
      %p162 = scmp.eq.s32.totalorder %s35, 1
      %p163 = por %p161, %p162
      %p164 = scmp.ne.s32.totalorder %s153, %s154
      %p165 = scmp.eq.s32.totalorder %s35, 0
      %p166 = por %p164, %p165
      %p167 = scmp.ne.s32.totalorder %s153, %s154
      %p168 = scmp.eq.s32.totalorder %s36, 1
      %p169 = por %p167, %p168
      %p171 = scmp.ne.s32.totalorder %s154, %s170
      %p172 = scmp.eq.s32.totalorder %s36, 0
      %p173 = por %p171, %p172
      %s174 = ssub.s32 %s30, %s37
      %p175 = scmp.eq.s32.totalorder %s174, 0
      %s177 = sadd.s32 %s176, 1
      %s178 = scalar_select %p175, %s176, %s177
      %p181 = pneg %p175
      %p182 = scmp.eq.s32.totalorder %s30, 1
      %p183 = por %p181, %p182
      %p184 = scmp.ne.s32.totalorder %s176, %s179
      %p185 = scmp.eq.s32.totalorder %s30, 0
      %p186 = por %p184, %p185
      %p187 = scmp.ne.s32.totalorder %s176, %s179
      %p188 = scmp.eq.s32.totalorder %s35, 1
      %p189 = por %p187, %p188
      %p190 = scmp.ne.s32.totalorder %s179, %s180
      %p191 = scmp.eq.s32.totalorder %s35, 0
      %p192 = por %p190, %p191
      %p193 = scmp.ne.s32.totalorder %s179, %s180
      %p194 = scmp.eq.s32.totalorder %s36, 1
      %p195 = por %p193, %p194
      %p197 = scmp.ne.s32.totalorder %s180, %s196
      %p198 = scmp.eq.s32.totalorder %s36, 0
      %p199 = por %p197, %p198
      %s200 = ssub.s32 %s30, %s37
      %p201 = scmp.eq.s32.totalorder %s200, 0
      %s203 = sadd.s32 %s202, 1
      %s204 = scalar_select %p201, %s202, %s203
      %p207 = pneg %p201
      %p208 = scmp.eq.s32.totalorder %s30, 1
      %p209 = por %p207, %p208
      %p210 = scmp.ne.s32.totalorder %s202, %s205
      %p211 = scmp.eq.s32.totalorder %s30, 0
      %p212 = por %p210, %p211
      %p213 = scmp.ne.s32.totalorder %s202, %s205
      %p214 = scmp.eq.s32.totalorder %s35, 1
      %p215 = por %p213, %p214
      %p216 = scmp.ne.s32.totalorder %s205, %s206
      %p217 = scmp.eq.s32.totalorder %s35, 0
      %p218 = por %p216, %p217
      %p219 = scmp.ne.s32.totalorder %s205, %s206
      %p220 = scmp.eq.s32.totalorder %s36, 1
      %p221 = por %p219, %p220
      %p223 = scmp.ne.s32.totalorder %s206, %s222
      %p224 = scmp.eq.s32.totalorder %s36, 0
      %p225 = por %p223, %p224
      %s226 = ssub.s32 %s30, %s37
      %p227 = scmp.eq.s32.totalorder %s226, 0
      %s229 = sadd.s32 %s228, 1
      %s230 = scalar_select %p227, %s228, %s229
      %p233 = pneg %p227
      %p234 = scmp.eq.s32.totalorder %s30, 1
      %p235 = por %p233, %p234
      %p236 = scmp.ne.s32.totalorder %s228, %s231
      %p237 = scmp.eq.s32.totalorder %s30, 0
      %p238 = por %p236, %p237
      %p239 = scmp.ne.s32.totalorder %s228, %s231
      %p240 = scmp.eq.s32.totalorder %s35, 1
      %p241 = por %p239, %p240
      %p242 = scmp.ne.s32.totalorder %s231, %s232
      %p243 = scmp.eq.s32.totalorder %s35, 0
      %p244 = por %p242, %p243
      %p245 = scmp.ne.s32.totalorder %s231, %s232
      %p246 = scmp.eq.s32.totalorder %s36, 1
      %p247 = por %p245, %p246
      %p249 = scmp.ne.s32.totalorder %s232, %s248
      %p250 = scmp.eq.s32.totalorder %s36, 0
      %p251 = por %p249, %p250
      %s252 = ssub.s32 %s30, %s37
      %p253 = scmp.eq.s32.totalorder %s252, 0
      %s255 = sadd.s32 %s254, 1
      %s256 = scalar_select %p253, %s254, %s255
      %p259 = pneg %p253
      %p260 = scmp.eq.s32.totalorder %s30, 1
      %p261 = por %p259, %p260
      %p262 = scmp.ne.s32.totalorder %s254, %s257
      %p263 = scmp.eq.s32.totalorder %s30, 0
      %p264 = por %p262, %p263
      %p265 = scmp.ne.s32.totalorder %s254, %s257
      %p266 = scmp.eq.s32.totalorder %s35, 1
      %p267 = por %p265, %p266
      %p268 = scmp.ne.s32.totalorder %s257, %s258
      %p269 = scmp.eq.s32.totalorder %s35, 0
      %p270 = por %p268, %p269
      %p271 = scmp.ne.s32.totalorder %s257, %s258
      %p272 = scmp.eq.s32.totalorder %s36, 1
      %p273 = por %p271, %p272
      %p275 = scmp.ne.s32.totalorder %s258, %s274
      %p276 = scmp.eq.s32.totalorder %s36, 0
      %p277 = por %p275, %p276
      %s278 = ssub.s32 %s30, %s37
      %p279 = scmp.eq.s32.totalorder %s278, 0
      %s281 = sadd.s32 %s280, 1
      %s282 = scalar_select %p279, %s280, %s281
      %p285 = pneg %p279
      %p286 = scmp.eq.s32.totalorder %s30, 1
      %p287 = por %p285, %p286
      %p288 = scmp.ne.s32.totalorder %s280, %s283
      %p289 = scmp.eq.s32.totalorder %s30, 0
      %p290 = por %p288, %p289
      %p291 = scmp.ne.s32.totalorder %s280, %s283
      %p292 = scmp.eq.s32.totalorder %s35, 1
      %p293 = por %p291, %p292
      %p294 = scmp.ne.s32.totalorder %s283, %s284
      %p295 = scmp.eq.s32.totalorder %s35, 0
      %p296 = por %p294, %p295
      %p297 = scmp.ne.s32.totalorder %s283, %s284
      %p298 = scmp.eq.s32.totalorder %s36, 1
      %p299 = por %p297, %p298
      %p301 = scmp.ne.s32.totalorder %s284, %s300
      %p302 = scmp.eq.s32.totalorder %s36, 0
      %p303 = por %p301, %p302
      %s304 = ssub.s32 %s30, %s37
      %p305 = scmp.eq.s32.totalorder %s304, 0
      %s307 = sadd.s32 %s306, 1
      %s308 = scalar_select %p305, %s306, %s307
      %p311 = pneg %p305
      %p312 = scmp.eq.s32.totalorder %s30, 1
      %p313 = por %p311, %p312
      %p314 = scmp.ne.s32.totalorder %s306, %s309
      %p315 = scmp.eq.s32.totalorder %s30, 0
      %p316 = por %p314, %p315
      %p317 = scmp.ne.s32.totalorder %s306, %s309
      %p318 = scmp.eq.s32.totalorder %s35, 1
      %p319 = por %p317, %p318
      %p320 = scmp.ne.s32.totalorder %s309, %s310
      %p321 = scmp.eq.s32.totalorder %s35, 0
      %p322 = por %p320, %p321
      %p323 = scmp.ne.s32.totalorder %s309, %s310
      %p324 = scmp.eq.s32.totalorder %s36, 1
      %p325 = por %p323, %p324
      %p327 = scmp.ne.s32.totalorder %s310, %s326
      %p328 = scmp.eq.s32.totalorder %s36, 0
      %p329 = por %p327, %p328
      %s330 = ssub.s32 %s30, %s37
      %p331 = scmp.eq.s32.totalorder %s330, 0
      %s333 = sadd.s32 %s332, 1
      %s334 = scalar_select %p331, %s332, %s333
      %p337 = pneg %p331
      %p338 = scmp.eq.s32.totalorder %s30, 1
      %p339 = por %p337, %p338
      %p340 = scmp.ne.s32.totalorder %s332, %s335
      %p341 = scmp.eq.s32.totalorder %s30, 0
      %p342 = por %p340, %p341
      %p343 = scmp.ne.s32.totalorder %s332, %s335
      %p344 = scmp.eq.s32.totalorder %s35, 1
      %p345 = por %p343, %p344
      %p346 = scmp.ne.s32.totalorder %s335, %s336
      %p347 = scmp.eq.s32.totalorder %s35, 0
      %p348 = por %p346, %p347
      %p349 = scmp.ne.s32.totalorder %s335, %s336
      %p350 = scmp.eq.s32.totalorder %s36, 1
      %p351 = por %p349, %p350
      %p353 = scmp.ne.s32.totalorder %s336, %s352
      %p354 = scmp.eq.s32.totalorder %s36, 0
      %p355 = por %p353, %p354
      %s356 = ssub.s32 %s30, %s37
      %p357 = scmp.eq.s32.totalorder %s356, 0
      %s359 = sadd.s32 %s358, 1
      %s360 = scalar_select %p357, %s358, %s359
      %p363 = pneg %p357
      %p364 = scmp.eq.s32.totalorder %s30, 1
      %p365 = por %p363, %p364
      %p366 = scmp.ne.s32.totalorder %s358, %s361
      %p367 = scmp.eq.s32.totalorder %s30, 0
      %p368 = por %p366, %p367
      %p369 = scmp.ne.s32.totalorder %s358, %s361
      %p370 = scmp.eq.s32.totalorder %s35, 1
      %p371 = por %p369, %p370
      %p372 = scmp.ne.s32.totalorder %s361, %s362
      %p373 = scmp.eq.s32.totalorder %s35, 0
      %p374 = por %p372, %p373
      %p375 = scmp.ne.s32.totalorder %s361, %s362
      %p376 = scmp.eq.s32.totalorder %s36, 1
      %p377 = por %p375, %p376
      %p379 = scmp.ne.s32.totalorder %s362, %s378
      %p380 = scmp.eq.s32.totalorder %s36, 0
      %p381 = por %p379, %p380
      %s382 = ssub.s32 %s30, %s37
      %p383 = scmp.eq.s32.totalorder %s382, 0
      %s385 = sadd.s32 %s384, 1
      %s386 = scalar_select %p383, %s384, %s385
      %p389 = pneg %p383
      %p390 = scmp.eq.s32.totalorder %s30, 1
      %p391 = por %p389, %p390
      %p392 = scmp.ne.s32.totalorder %s384, %s387
      %p393 = scmp.eq.s32.totalorder %s30, 0
      %p394 = por %p392, %p393
      %p395 = scmp.ne.s32.totalorder %s384, %s387
      %p396 = scmp.eq.s32.totalorder %s35, 1
      %p397 = por %p395, %p396
      %p398 = scmp.ne.s32.totalorder %s387, %s388
      %p399 = scmp.eq.s32.totalorder %s35, 0
      %p400 = por %p398, %p399
      %p401 = scmp.ne.s32.totalorder %s387, %s388
      %p402 = scmp.eq.s32.totalorder %s36, 1
      %p403 = por %p401, %p402
      %p405 = scmp.ne.s32.totalorder %s388, %s404
      %p406 = scmp.eq.s32.totalorder %s36, 0
      %p407 = por %p405, %p406
      %s408 = ssub.s32 %s30, %s37
      %p409 = scmp.eq.s32.totalorder %s408, 0
      %s411 = sadd.s32 %s410, 1
      %s412 = scalar_select %p409, %s410, %s411
      %p415 = pneg %p409
      %p416 = scmp.eq.s32.totalorder %s30, 1
      %p417 = por %p415, %p416
      %p418 = scmp.ne.s32.totalorder %s410, %s413
      %p419 = scmp.eq.s32.totalorder %s30, 0
      %p420 = por %p418, %p419
      %p421 = scmp.ne.s32.totalorder %s410, %s413
      %p422 = scmp.eq.s32.totalorder %s35, 1
      %p423 = por %p421, %p422
      %p424 = scmp.ne.s32.totalorder %s413, %s414
      %p425 = scmp.eq.s32.totalorder %s35, 0
      %p426 = por %p424, %p425
      %p427 = scmp.ne.s32.totalorder %s413, %s414
      %p428 = scmp.eq.s32.totalorder %s36, 1
      %p429 = por %p427, %p428
      %p431 = scmp.ne.s32.totalorder %s414, %s430
      %p432 = scmp.eq.s32.totalorder %s36, 0
      %p433 = por %p431, %p432
      %s435 = sadd.s32 %s434, 1
      %p438 = scmp.eq.s32.totalorder %s30, 1
      %p439 = scmp.ne.s32.totalorder %s434, %s436
      %p440 = scmp.eq.s32.totalorder %s30, 0
      %p441 = por %p439, %p440
      %p442 = scmp.ne.s32.totalorder %s434, %s436
      %p443 = scmp.eq.s32.totalorder %s35, 1
      %p444 = por %p442, %p443
      %p445 = scmp.ne.s32.totalorder %s436, %s437
      %p446 = scmp.eq.s32.totalorder %s35, 0
      %p447 = por %p445, %p446
      %p448 = scmp.ne.s32.totalorder %s436, %s437
      %p449 = scmp.eq.s32.totalorder %s36, 1
      %p450 = por %p448, %p449
      %p452 = scmp.ne.s32.totalorder %s437, %s451
      %p453 = scmp.eq.s32.totalorder %s36, 0
      %p454 = por %p452, %p453
      %s456 = sadd.s32 %s455, 1
      %p459 = scmp.eq.s32.totalorder %s30, 1
      %p460 = scmp.ne.s32.totalorder %s455, %s457
      %p461 = scmp.eq.s32.totalorder %s30, 0
      %p462 = por %p460, %p461
      %p463 = scmp.ne.s32.totalorder %s455, %s457
      %p464 = scmp.eq.s32.totalorder %s35, 1
      %p465 = por %p463, %p464
      %p466 = scmp.ne.s32.totalorder %s457, %s458
      %p467 = scmp.eq.s32.totalorder %s35, 0
      %p468 = por %p466, %p467
      %p469 = scmp.ne.s32.totalorder %s457, %s458
      %p470 = scmp.eq.s32.totalorder %s36, 1
      %p471 = por %p469, %p470
      %p473 = scmp.ne.s32.totalorder %s458, %s472
      %p474 = scmp.eq.s32.totalorder %s36, 0
      %p475 = por %p473, %p474
      %s477 = sadd.s32 %s476, 1
      %p480 = scmp.eq.s32.totalorder %s30, 1
      %p481 = scmp.ne.s32.totalorder %s476, %s478
      %p482 = scmp.eq.s32.totalorder %s30, 0
      %p483 = por %p481, %p482
      %p484 = scmp.ne.s32.totalorder %s476, %s478
      %p485 = scmp.eq.s32.totalorder %s35, 1
      %p486 = por %p484, %p485
      %p487 = scmp.ne.s32.totalorder %s478, %s479
      %p488 = scmp.eq.s32.totalorder %s35, 0
      %p489 = por %p487, %p488
      %p490 = scmp.ne.s32.totalorder %s478, %s479
      %p491 = scmp.eq.s32.totalorder %s36, 1
      %p492 = por %p490, %p491
      %p494 = scmp.ne.s32.totalorder %s479, %s493
      %p495 = scmp.eq.s32.totalorder %s36, 0
      %p496 = por %p494, %p495
      %p497 = scmp.le.s32.totalorder 1, %s30
      %p498 = scmp.lt.s32.totalorder %s30, 3
      %p499 = pnand %p497, %p498
      %p500 = pneg %p499
      // Predicated region
      $region9: #{bert_base_uncased_forward.1} parent=5 // pred_check
        _
      $region10: #{bert_base_uncased_forward.1} parent=5 // pred_check_branch
        %502 = sbr.rel (%p499) target = $region12
      $region11: #{bert_base_uncased_forward.1} parent=5 // pred_region
        %s503 = ssub.s32 %s30, 1
        // Predicated region
        $region13: #{bert_base_uncased_forward.1} parent=11 // pred_check
          %p504 = pneg %p51
        $region14: #{bert_base_uncased_forward.1} parent=11 // pred_check_branch
          %506 = sbr.rel (%p504) target = $region16
        $region15: #{bert_base_uncased_forward.1} parent=11 // pred_region
          _
        $region16: #{bert_base_uncased_forward.1} parent=11 // pred_fallthru
          _
        // Predicated region
        $region17: #{bert_base_uncased_forward.1} parent=11 // pred_check
          %p507 = pneg %p72
        $region18: #{bert_base_uncased_forward.1} parent=11 // pred_check_branch
          %509 = sbr.rel (%p507) target = $region20
        $region19: #{bert_base_uncased_forward.1} parent=11 // pred_region
          _
        $region20: #{bert_base_uncased_forward.1} parent=11 // pred_fallthru
          _
        // Predicated region
        $region21: #{bert_base_uncased_forward.1} parent=11 // pred_check
          %p510 = pneg %p93
        $region22: #{bert_base_uncased_forward.1} parent=11 // pred_check_branch
          %512 = sbr.rel (%p510) target = $region24
        $region23: #{bert_base_uncased_forward.1} parent=11 // pred_region
          _
        $region24: #{bert_base_uncased_forward.1} parent=11 // pred_fallthru
          _
        // Predicated region
        $region25: #{bert_base_uncased_forward.1} parent=11 // pred_check
          %p513 = pneg %p114
        $region26: #{bert_base_uncased_forward.1} parent=11 // pred_check_branch
          %515 = sbr.rel (%p513) target = $region28
        $region27: #{bert_base_uncased_forward.1} parent=11 // pred_region
          _
        $region28: #{bert_base_uncased_forward.1} parent=11 // pred_fallthru
          _
        // Predicated region
        $region29: #{bert_base_uncased_forward.1} parent=11 // pred_check
          %p516 = pneg %p447
        $region30: #{bert_base_uncased_forward.1} parent=11 // pred_check_branch
          %518 = sbr.rel (%p516) target = $region32
        $region31: #{bert_base_uncased_forward.1} parent=11 // pred_region
          _
        $region32: #{bert_base_uncased_forward.1} parent=11 // pred_fallthru
          _
        // Predicated region
        $region33: #{bert_base_uncased_forward.1} parent=11 // pred_check
          %p519 = pneg %p468
        $region34: #{bert_base_uncased_forward.1} parent=11 // pred_check_branch
          %521 = sbr.rel (%p519) target = $region36
        $region35: #{bert_base_uncased_forward.1} parent=11 // pred_region
          _
        $region36: #{bert_base_uncased_forward.1} parent=11 // pred_fallthru
          _
      $region12: #{bert_base_uncased_forward.1} parent=5 // pred_fallthru
        _
      %p522 = scmp.lt.s32.totalorder %s30, 2
      // Predicated region
      $region37: #{bert_base_uncased_forward.1} parent=5 // pred_check
        %p523 = pneg %p522
      $region38: #{bert_base_uncased_forward.1} parent=5 // pred_check_branch
        %525 = sbr.rel (%p523) target = $region40
      $region39: #{bert_base_uncased_forward.1} parent=5 // pred_region
        // Predicated region
        $region41: #{bert_base_uncased_forward.1} parent=39 // pred_check
          %p526 = pneg %p134
        $region42: #{bert_base_uncased_forward.1} parent=39 // pred_check_branch
          %528 = sbr.rel (%p526) target = $region44
        $region43: #{bert_base_uncased_forward.1} parent=39 // pred_region
          %s529 = sand.u32 %s124, 1
          %s530 = scalar_lea.sflag [#allocation4], %s529
          %s531 = sand.u32 %s124, 1
          %s532 = smul.addr %s531, 384
          %s533 = scalar_lea.vmem [#allocation3], %s532
          %s535 = ssub.s32 6144, 6144
          %536 = vsyncadd %s530, %s535
          %s537 = smul.addr %s30, 48
          %s538 = smul.addr %s537, 128
          %s539 = scalar_lea.hbm %s4, %s538
          %s540 = sshll.u32 %s533, 4
          %s541 = int_to_ptr.vmem [resolvable:$true] %s540
          %546 = dma.hbm_to_vmem [thread:$0]  %s539, 6144, %s541, %s530, 384, 384, 24
        $region44: #{bert_base_uncased_forward.1} parent=39 // pred_fallthru
          _
        // Predicated region
        $region45: #{bert_base_uncased_forward.1} parent=39 // pred_check
          %p547 = pneg %p160
        $region46: #{bert_base_uncased_forward.1} parent=39 // pred_check_branch
          %549 = sbr.rel (%p547) target = $region48
        $region47: #{bert_base_uncased_forward.1} parent=39 // pred_region
          %p550 = scmp.lt.s32.totalorder %s30, 1
          %s551 = scalar_select %p550, %s30, 1
          %s552 = smul.addr %s551, 3
          %s553 = scalar_lea.vmem %s5, %s552
        $region48: #{bert_base_uncased_forward.1} parent=39 // pred_fallthru
          _
        // Predicated region
        $region49: #{bert_base_uncased_forward.1} parent=39 // pred_check
          %p554 = pneg %p186
        $region50: #{bert_base_uncased_forward.1} parent=39 // pred_check_branch
          %556 = sbr.rel (%p554) target = $region52
        $region51: #{bert_base_uncased_forward.1} parent=39 // pred_region
          %p557 = scmp.lt.s32.totalorder %s30, 1
          %s558 = scalar_select %p557, %s30, 1
          %s559 = smul.addr %s558, 16
          %s560 = smul.addr %s559, 8
          %s561 = scalar_lea.vmem %s6, %s560
        $region52: #{bert_base_uncased_forward.1} parent=39 // pred_fallthru
          _
        // Predicated region
        $region53: #{bert_base_uncased_forward.1} parent=39 // pred_check
          %p562 = pneg %p212
        $region54: #{bert_base_uncased_forward.1} parent=39 // pred_check_branch
          %564 = sbr.rel (%p562) target = $region56
        $region55: #{bert_base_uncased_forward.1} parent=39 // pred_region
          %p565 = scmp.lt.s32.totalorder %s30, 1
          %s566 = scalar_select %p565, %s30, 1
          %s567 = scalar_lea.vmem %s7, %s566
        $region56: #{bert_base_uncased_forward.1} parent=39 // pred_fallthru
          _
        // Predicated region
        $region57: #{bert_base_uncased_forward.1} parent=39 // pred_check
          %p568 = pneg %p238
        $region58: #{bert_base_uncased_forward.1} parent=39 // pred_check_branch
          %570 = sbr.rel (%p568) target = $region60
        $region59: #{bert_base_uncased_forward.1} parent=39 // pred_region
          %p571 = scmp.lt.s32.totalorder %s30, 1
          %s572 = scalar_select %p571, %s30, 1
          %s573 = scalar_lea.vmem %s8, %s572
        $region60: #{bert_base_uncased_forward.1} parent=39 // pred_fallthru
          _
        // Predicated region
        $region61: #{bert_base_uncased_forward.1} parent=39 // pred_check
          %p574 = pneg %p264
        $region62: #{bert_base_uncased_forward.1} parent=39 // pred_check_branch
          %576 = sbr.rel (%p574) target = $region64
        $region63: #{bert_base_uncased_forward.1} parent=39 // pred_region
          %p577 = scmp.lt.s32.totalorder %s30, 1
          %s578 = scalar_select %p577, %s30, 1
          %s579 = scalar_lea.vmem %s9, %s578
        $region64: #{bert_base_uncased_forward.1} parent=39 // pred_fallthru
          _
        // Predicated region
        $region65: #{bert_base_uncased_forward.1} parent=39 // pred_check
          %p580 = pneg %p290
        $region66: #{bert_base_uncased_forward.1} parent=39 // pred_check_branch
          %582 = sbr.rel (%p580) target = $region68
        $region67: #{bert_base_uncased_forward.1} parent=39 // pred_region
          %p583 = scmp.lt.s32.totalorder %s30, 1
          %s584 = scalar_select %p583, %s30, 1
          %s585 = smul.addr %s584, 32
          %s586 = smul.addr %s585, 8
          %s587 = scalar_lea.vmem %s10, %s586
        $region68: #{bert_base_uncased_forward.1} parent=39 // pred_fallthru
          _
        // Predicated region
        $region69: #{bert_base_uncased_forward.1} parent=39 // pred_check
          %p588 = pneg %p316
        $region70: #{bert_base_uncased_forward.1} parent=39 // pred_check_branch
          %590 = sbr.rel (%p588) target = $region72
        $region71: #{bert_base_uncased_forward.1} parent=39 // pred_region
          %p591 = scmp.lt.s32.totalorder %s30, 1
          %s592 = scalar_select %p591, %s30, 1
          %s593 = smul.addr %s592, 2
          %s594 = scalar_lea.vmem %s11, %s593
        $region72: #{bert_base_uncased_forward.1} parent=39 // pred_fallthru
          _
        // Predicated region
        $region73: #{bert_base_uncased_forward.1} parent=39 // pred_check
          %p595 = pneg %p342
        $region74: #{bert_base_uncased_forward.1} parent=39 // pred_check_branch
          %597 = sbr.rel (%p595) target = $region76
        $region75: #{bert_base_uncased_forward.1} parent=39 // pred_region
          %s598 = sand.u32 %s332, 1
          %s599 = scalar_lea.sflag [#allocation6], %s598
          %s600 = sand.u32 %s332, 1
          %s601 = smul.addr %s600, 256
          %s602 = scalar_lea.vmem [#allocation5], %s601
          %s604 = ssub.s32 4096, 4096
          %605 = vsyncadd %s599, %s604
          %s606 = smul.addr %s30, 32
          %s607 = smul.addr %s606, 128
          %s608 = scalar_lea.hbm %s12, %s607
          %s609 = sshll.u32 %s602, 4
          %s610 = int_to_ptr.vmem [resolvable:$true] %s609
          %615 = dma.hbm_to_vmem [thread:$0]  %s608, 4096, %s610, %s599, 128, 128, 8
        $region76: #{bert_base_uncased_forward.1} parent=39 // pred_fallthru
          _
        // Predicated region
        $region77: #{bert_base_uncased_forward.1} parent=39 // pred_check
          %p616 = pneg %p368
        $region78: #{bert_base_uncased_forward.1} parent=39 // pred_check_branch
          %618 = sbr.rel (%p616) target = $region80
        $region79: #{bert_base_uncased_forward.1} parent=39 // pred_region
          %p619 = scmp.lt.s32.totalorder %s30, 1
          %s620 = scalar_select %p619, %s30, 1
          %s621 = scalar_lea.vmem %s13, %s620
        $region80: #{bert_base_uncased_forward.1} parent=39 // pred_fallthru
          _
        // Predicated region
        $region81: #{bert_base_uncased_forward.1} parent=39 // pred_check
          %p622 = pneg %p394
        $region82: #{bert_base_uncased_forward.1} parent=39 // pred_check_branch
          %624 = sbr.rel (%p622) target = $region84
        $region83: #{bert_base_uncased_forward.1} parent=39 // pred_region
          %p625 = scmp.lt.s32.totalorder %s30, 1
          %s626 = scalar_select %p625, %s30, 1
          %s627 = scalar_lea.vmem %s14, %s626
        $region84: #{bert_base_uncased_forward.1} parent=39 // pred_fallthru
          _
        // Predicated region
        $region85: #{bert_base_uncased_forward.1} parent=39 // pred_check
          %p628 = pneg %p420
        $region86: #{bert_base_uncased_forward.1} parent=39 // pred_check_branch
          %630 = sbr.rel (%p628) target = $region88
        $region87: #{bert_base_uncased_forward.1} parent=39 // pred_region
          %p631 = scmp.lt.s32.totalorder %s30, 1
          %s632 = scalar_select %p631, %s30, 1
          %s633 = scalar_lea.vmem %s15, %s632
        $region88: #{bert_base_uncased_forward.1} parent=39 // pred_fallthru
          _
      $region40: #{bert_base_uncased_forward.1} parent=5 // pred_fallthru
        _
      %p634 = scmp.le.s32.totalorder 1, %s30
      %p635 = scmp.lt.s32.totalorder %s30, 3
      %p636 = pnand %p634, %p635
      %p637 = pneg %p636
      // Predicated region
      $region89: #{bert_base_uncased_forward.1} parent=5 // pred_check
        _
      $region90: #{bert_base_uncased_forward.1} parent=5 // pred_check_branch
        %639 = sbr.rel (%p636) target = $region92
      $region91: #{bert_base_uncased_forward.1} parent=5 // pred_region
        %s640 = ssub.s32 %s30, 1
        %s641 = sand.u32 %s127, 1
        %s642 = scalar_lea.sflag [#allocation4], %s641
        %s643 = sand.u32 %s127, 1
        %s644 = smul.addr %s643, 384
        %s645 = scalar_lea.vmem [#allocation3], %s644
        // Predicated region
        $region93: #{bert_base_uncased_forward.1} parent=91 // pred_check
          %p646 = pneg %p140
        $region94: #{bert_base_uncased_forward.1} parent=91 // pred_check_branch
          %648 = sbr.rel (%p646) target = $region96
        $region95: #{bert_base_uncased_forward.1} parent=91 // pred_region
          %649 = dma.done %s642, 6144
        $region96: #{bert_base_uncased_forward.1} parent=91 // pred_fallthru
          _
        %s650 = sand.u32 %s335, 1
        %s651 = scalar_lea.sflag [#allocation6], %s650
        %s652 = sand.u32 %s335, 1
        %s653 = smul.addr %s652, 256
        %s654 = scalar_lea.vmem [#allocation5], %s653
        // Predicated region
        $region97: #{bert_base_uncased_forward.1} parent=91 // pred_check
          %p655 = pneg %p348
        $region98: #{bert_base_uncased_forward.1} parent=91 // pred_check_branch
          %657 = sbr.rel (%p655) target = $region100
        $region99: #{bert_base_uncased_forward.1} parent=91 // pred_region
          %658 = dma.done %s651, 4096
        $region100: #{bert_base_uncased_forward.1} parent=91 // pred_fallthru
          _
        %p659 = pneg %p51
        %p660 = pneg %p48
        %p661 = pneg %p72
        %p662 = pneg %p69
        %p663 = pneg %p93
        %p664 = pneg %p90
        %p665 = pneg %p114
        %p666 = pneg %p111
        %s667 = sand.u32 %s127, 1
        %s668 = scalar_lea.sflag [#allocation4], %s667
        %s669 = sand.u32 %s127, 1
        %s670 = smul.addr %s669, 384
        %s671 = scalar_lea.vmem [#allocation3], %s670
        %p672 = pneg %p140
        %p673 = pneg %p137
        %p674 = scmp.lt.s32.totalorder %s35, 1
        %s675 = scalar_select %p674, %s35, 1
        %s676 = smul.addr %s675, 3
        %s677 = scalar_lea.vmem %s5, %s676
        %p678 = pneg %p166
        %p679 = pneg %p163
        %p680 = scmp.lt.s32.totalorder %s35, 1
        %s681 = scalar_select %p680, %s35, 1
        %s682 = smul.addr %s681, 16
        %s683 = smul.addr %s682, 8
        %s684 = scalar_lea.vmem %s6, %s683
        %p685 = pneg %p192
        %p686 = pneg %p189
        %p687 = scmp.lt.s32.totalorder %s35, 1
        %s688 = scalar_select %p687, %s35, 1
        %s689 = scalar_lea.vmem %s7, %s688
        %p690 = pneg %p218
        %p691 = pneg %p215
        %p692 = scmp.lt.s32.totalorder %s35, 1
        %s693 = scalar_select %p692, %s35, 1
        %s694 = scalar_lea.vmem %s8, %s693
        %p695 = pneg %p244
        %p696 = pneg %p241
        %p697 = scmp.lt.s32.totalorder %s35, 1
        %s698 = scalar_select %p697, %s35, 1
        %s699 = scalar_lea.vmem %s9, %s698
        %p700 = pneg %p270
        %p701 = pneg %p267
        %p702 = scmp.lt.s32.totalorder %s35, 1
        %s703 = scalar_select %p702, %s35, 1
        %s704 = smul.addr %s703, 32
        %s705 = smul.addr %s704, 8
        %s706 = scalar_lea.vmem %s10, %s705
        %p707 = pneg %p296
        %p708 = pneg %p293
        %p709 = scmp.lt.s32.totalorder %s35, 1
        %s710 = scalar_select %p709, %s35, 1
        %s711 = smul.addr %s710, 2
        %s712 = scalar_lea.vmem %s11, %s711
        %p713 = pneg %p322
        %p714 = pneg %p319
        %s715 = sand.u32 %s335, 1
        %s716 = scalar_lea.sflag [#allocation6], %s715
        %s717 = sand.u32 %s335, 1
        %s718 = smul.addr %s717, 256
        %s719 = scalar_lea.vmem [#allocation5], %s718
        %p720 = pneg %p348
        %p721 = pneg %p345
        %p722 = scmp.lt.s32.totalorder %s35, 1
        %s723 = scalar_select %p722, %s35, 1
        %s724 = scalar_lea.vmem %s13, %s723
        %p725 = pneg %p374
        %p726 = pneg %p371
        %p727 = scmp.lt.s32.totalorder %s35, 1
        %s728 = scalar_select %p727, %s35, 1
        %s729 = scalar_lea.vmem %s14, %s728
        %p730 = pneg %p400
        %p731 = pneg %p397
        %p732 = scmp.lt.s32.totalorder %s35, 1
        %s733 = scalar_select %p732, %s35, 1
        %s734 = scalar_lea.vmem %s15, %s733
        %p735 = pneg %p426
        %p736 = pneg %p423
        %p737 = pneg %p447
        %p738 = pneg %p444
        %p739 = pneg %p468
        %p740 = pneg %p465
        %p741 = pneg %p489
        %p742 = pneg %p486
        %p743 = scmp.lt.s32.totalorder %s35, 1
        %s744 = scalar_select %p743, %s35, 1
        %s745 = smul.addr %s744, 3
        %s746 = scalar_lea.vmem %s5, %s745
        %p747 = scmp.lt.s32.totalorder %s35, 1
        %s748 = scalar_select %p747, %s35, 1
        %s749 = smul.addr %s748, 16
        %s750 = smul.addr %s749, 8
        %s751 = scalar_lea.vmem %s6, %s750
        %p752 = scmp.lt.s32.totalorder %s35, 1
        %s753 = scalar_select %p752, %s35, 1
        %s754 = scalar_lea.vmem %s7, %s753
        %p755 = scmp.lt.s32.totalorder %s35, 1
        %s756 = scalar_select %p755, %s35, 1
        %s757 = scalar_lea.vmem %s8, %s756
        %p758 = scmp.lt.s32.totalorder %s35, 1
        %s759 = scalar_select %p758, %s35, 1
        %s760 = scalar_lea.vmem %s9, %s759
        %p761 = scmp.lt.s32.totalorder %s35, 1
        %s762 = scalar_select %p761, %s35, 1
        %s763 = smul.addr %s762, 32
        %s764 = smul.addr %s763, 8
        %s765 = scalar_lea.vmem %s10, %s764
        %p766 = scmp.lt.s32.totalorder %s35, 1
        %s767 = scalar_select %p766, %s35, 1
        %s768 = smul.addr %s767, 2
        %s769 = scalar_lea.vmem %s11, %s768
        %p770 = scmp.lt.s32.totalorder %s35, 1
        %s771 = scalar_select %p770, %s35, 1
        %s772 = scalar_lea.vmem %s13, %s771
        %p773 = scmp.lt.s32.totalorder %s35, 1
        %s774 = scalar_select %p773, %s35, 1
        %s775 = scalar_lea.vmem %s14, %s774
        %p776 = scmp.lt.s32.totalorder %s35, 1
        %s777 = scalar_select %p776, %s35, 1
        %s778 = scalar_lea.vmem %s15, %s777
        %p779 = scmp.eq.s32.totalorder %s35, 0
        // Predicated region
        $region101: #{bert_base_uncased_forward.1} parent=91 // pred_check
          %p780 = pneg %p779
        $region102: #{bert_base_uncased_forward.1} parent=91 // pred_check_branch
          %782 = sbr.rel (%p780) target = $region104
        $region103: #{bert_base_uncased_forward.1} parent=91 // pred_region
          %v783 = vld [vmem:[%s0] sm:$0xff]
          %v784 = vld [vmem:[%s0 + $0x8] sm:$0xff]
          %v785 = vld [vmem:[%s1] sm:$0x1]
          %v786 = vld [vmem:[%s2] sm:$0x1]
          %787 = vadd.xlane.f32.xlu0 %v783
          %v788 = vpop.xlane.xlu0 %787
          %789 = vadd.xlane.f32.xlu0 %v784
          %v790 = vpop.xlane.xlu0 %789
          %v791 = vrcp.pop 128.0
          %v792 = vmul.f32 %v788, %v791
          %v793 = vmul.f32 %v790, %v791
          %v794 = vsub.f32 %v783, %v792
          %v795 = vsub.f32 %v784, %v793
          %v796 = vmul.f32 %v794, %v794
          %v797 = vmul.f32 %v795, %v795
          %798 = vadd.xlane.f32.xlu0 %v796
          %v799 = vpop.xlane.xlu0 %798
          %800 = vadd.xlane.f32.xlu0 %v797
          %v801 = vpop.xlane.xlu0 %800
          %v802 = vmul.f32 %v799, %v791
          %v803 = vmul.f32 %v801, %v791
          %v804 = vadd.f32 %v802, 1e-12
          %v805 = vadd.f32 %v803, 1e-12
          %v806 = vrsqrt.pop %v804
          %v807 = vrsqrt.pop %v805
          %v808 = vmul.f32 %v794, %v806
          %v809 = vmul.f32 %v795, %v807
          %v811 = vlaneseq
          %v812 = vshrl.u32 %v811, 7
          %v813 = vsub.s32 0, %v812
          %v814 = vrot.slane %v785, %v813
          %v816 = vmul.f32 %v808, %v814
          %v817 = vmul.f32 %v809, %v814
          %v819 = vlaneseq
          %v820 = vshrl.u32 %v819, 7
          %v821 = vsub.s32 0, %v820
          %v822 = vrot.slane %v786, %v821
          %v824 = vadd.f32 %v816, %v822
          %v825 = vadd.f32 %v817, %v822
          %826 = vst [vmem:[#allocation2] sm:$0xff] %v824
          %827 = vst [vmem:[#allocation2 + $0x8] sm:$0xff] %v825
        $region104: #{bert_base_uncased_forward.1} parent=91 // pred_fallthru
          _
        %v828 = vld [vmem:[#allocation2] sm:$0xff]
        %v829 = vld [vmem:[#allocation2 + $0x8] sm:$0xff]
        %v830 = vld [vmem:[%s645] sm:$0xff]
        %v831 = vld [vmem:[%s645 + $0x8] sm:$0xff]
        %v832 = vld [vmem:[%s645 + $0x10] sm:$0xff]
        %v833 = vld [vmem:[%s645 + $0x18] sm:$0xff]
        %v834 = vld [vmem:[%s645 + $0x20] sm:$0xff]
        %v835 = vld [vmem:[%s645 + $0x28] sm:$0xff]
        %v836 = vld [vmem:[%s645 + $0x30] sm:$0xff]
        %v837 = vld [vmem:[%s645 + $0x38] sm:$0xff]
        %v838 = vld [vmem:[%s645 + $0x40] sm:$0xff]
        %v839 = vld [vmem:[%s645 + $0x48] sm:$0xff]
        %v840 = vld [vmem:[%s645 + $0x50] sm:$0xff]
        %v841 = vld [vmem:[%s645 + $0x58] sm:$0xff]
        %v842 = vld [vmem:[%s645 + $0x60] sm:$0xff]
        %v843 = vld [vmem:[%s645 + $0x68] sm:$0xff]
        %v844 = vld [vmem:[%s645 + $0x70] sm:$0xff]
        %v845 = vld [vmem:[%s645 + $0x78] sm:$0xff]
        %v846 = vld [vmem:[%s645 + $0x80] sm:$0xff]
        %v847 = vld [vmem:[%s645 + $0x88] sm:$0xff]
        %v848 = vld [vmem:[%s645 + $0x90] sm:$0xff]
        %v849 = vld [vmem:[%s645 + $0x98] sm:$0xff]
        %v850 = vld [vmem:[%s645 + $0xa0] sm:$0xff]
        %v851 = vld [vmem:[%s645 + $0xa8] sm:$0xff]
        %v852 = vld [vmem:[%s645 + $0xb0] sm:$0xff]
        %v853 = vld [vmem:[%s645 + $0xb8] sm:$0xff]
        %v854 = vld [vmem:[%s645 + $0xc0] sm:$0xff]
        %v855 = vld [vmem:[%s645 + $0xc8] sm:$0xff]
        %v856 = vld [vmem:[%s645 + $0xd0] sm:$0xff]
        %v857 = vld [vmem:[%s645 + $0xd8] sm:$0xff]
        %v858 = vld [vmem:[%s645 + $0xe0] sm:$0xff]
        %v859 = vld [vmem:[%s645 + $0xe8] sm:$0xff]
        %v860 = vld [vmem:[%s645 + $0xf0] sm:$0xff]
        %v861 = vld [vmem:[%s645 + $0xf8] sm:$0xff]
        %v862 = vld [vmem:[%s645 + $0x100] sm:$0xff]
        %v863 = vld [vmem:[%s645 + $0x108] sm:$0xff]
        %v864 = vld [vmem:[%s645 + $0x110] sm:$0xff]
        %v865 = vld [vmem:[%s645 + $0x118] sm:$0xff]
        %v866 = vld [vmem:[%s645 + $0x120] sm:$0xff]
        %v867 = vld [vmem:[%s645 + $0x128] sm:$0xff]
        %v868 = vld [vmem:[%s645 + $0x130] sm:$0xff]
        %v869 = vld [vmem:[%s645 + $0x138] sm:$0xff]
        %v870 = vld [vmem:[%s645 + $0x140] sm:$0xff]
        %v871 = vld [vmem:[%s645 + $0x148] sm:$0xff]
        %v872 = vld [vmem:[%s645 + $0x150] sm:$0xff]
        %v873 = vld [vmem:[%s645 + $0x158] sm:$0xff]
        %v874 = vld [vmem:[%s645 + $0x160] sm:$0xff]
        %v875 = vld [vmem:[%s645 + $0x168] sm:$0xff]
        %v876 = vld [vmem:[%s645 + $0x170] sm:$0xff]
        %v877 = vld [vmem:[%s645 + $0x178] sm:$0xff]
        %v878 = vld [vmem:[%s746] sm:$0x7]
        %v880 = vlaneseq
        %v881 = vshrl.u32 %v880, 7
        %v882 = vsub.s32 0, %v881
        %v883 = vrot.slane %v878, %v882
        %v884 = vlaneseq
        %v885 = vshrl.u32 %v884, 7
        %v886 = vsub.s32 1, %v885
        %v887 = vrot.slane %v878, %v886
        %v888 = vlaneseq
        %v889 = vshrl.u32 %v888, 7
        %v890 = vsub.s32 2, %v889
        %v891 = vrot.slane %v878, %v890
        %895 = vmatprep.subr.mxu0 %v831
        %896 = vmatpush1.msra.mxu0 %v830
        %897 = vmatprep.subr.mxu0 %v834
        %898 = vmatpush1.msra.mxu0 %v833
        %899 = vmatprep.subr.mxu0 %v837
        %900 = vmatpush1.msra.mxu0 %v836
        %901 = vmatprep.subr.mxu0 %v840
        %902 = vmatpush1.msra.mxu0 %v839
        %903 = vmatprep.subr.mxu0 %v843
        %904 = vmatpush1.msra.mxu0 %v842
        %905 = vmatprep.subr.mxu0 %v846
        %906 = vmatpush1.msra.mxu0 %v845
        %907 = vmatprep.subr.mxu0 %v849
        %908 = vmatpush1.msra.mxu0 %v848
        %909 = vmatprep.subr.mxu0 %v852
        %910 = vmatpush1.msra.mxu0 %v851
        %911 = vmatprep.subr.mxu0 %v855
        %912 = vmatpush1.msra.mxu0 %v854
        %913 = vmatprep.subr.mxu0 %v858
        %914 = vmatpush1.msra.mxu0 %v857
        %915 = vmatprep.subr.mxu0 %v861
        %916 = vmatpush1.msra.mxu0 %v860
        %917 = vmatprep.subr.mxu0 %v864
        %918 = vmatpush1.msra.mxu0 %v863
        %919 = vmatprep.subr.mxu0 %v867
        %920 = vmatpush1.msra.mxu0 %v866
        %921 = vmatprep.subr.mxu0 %v870
        %922 = vmatpush1.msra.mxu0 %v869
        %923 = vmatprep.subr.mxu0 %v873
        %924 = vmatpush1.msra.mxu0 %v872
        %925 = vmatprep.subr.mxu0 %v876
        %926 = vmatpush1.msra.mxu0 %v875
        %927 = vmatprep.subr.mxu0 0.0
        %928 = vmatpush1.msra.mxu0 0.0
        %929 = vmatprep.subr.mxu0 0.0
        %930 = vmatpush1.msra.mxu0 0.0
        %931 = vmatprep.subr.mxu0 0.0
        %932 = vmatpush1.msra.mxu0 0.0
        %933 = vmatprep.subr.mxu0 0.0
        %934 = vmatpush1.msra.mxu0 0.0
        %935 = vmatprep.subr.mxu0 0.0
        %936 = vmatpush1.msra.mxu0 0.0
        %937 = vmatprep.subr.mxu0 0.0
        %938 = vmatpush1.msra.mxu0 0.0
        %939 = vmatprep.subr.mxu0 0.0
        %940 = vmatpush1.msra.mxu0 0.0
        %941 = vmatprep.subr.mxu0 0.0
        %942 = vmatpush1.msra.mxu0 0.0
        %943 = vmatprep.subr.mxu0 0.0
        %944 = vmatpush1.msra.mxu0 0.0
        %945 = vmatprep.subr.mxu0 0.0
        %946 = vmatpush1.msra.mxu0 0.0
        %947 = vmatprep.subr.mxu0 0.0
        %948 = vmatpush1.msra.mxu0 0.0
        %949 = vmatprep.subr.mxu0 0.0
        %950 = vmatpush1.msra.mxu0 0.0
        %951 = vmatprep.subr.mxu0 0.0
        %952 = vmatpush1.msra.mxu0 0.0
        %953 = vmatprep.subr.mxu0 0.0
        %954 = vmatpush1.msra.mxu0 0.0
        %955 = vmatprep.subr.mxu0 0.0
        %956 = vmatpush1.msra.mxu0 0.0
        %957 = vmatprep.subr.mxu0 0.0
        %958 = vmatpush1.msra.mxu0 0.0
        %959 = vmatprep.mubr.f32.mxu0 0.0
        %960 = vmatmul.mubr.f32.gmra.mrb[0].mxu0 %v828
        %v961 = vpop.f32.mrb[0].mxu0
        %v962 = vadd.f32 %v883, %v961
        %v963 = vpop.f32.mrb[0].mxu0
        %v964 = vadd.f32 %v887, %v963
        %965 = vmatprep.mubr.f32.mxu0 0.0
        %966 = vmatmul.mubr.f32.gmra.mrb[0].mxu0 %v829
        %v967 = vpop.f32.mrb[0].mxu0
        %v968 = vadd.f32 %v883, %v967
        %v969 = vpop.f32.mrb[0].mxu0
        %v970 = vadd.f32 %v887, %v969
        %971 = vdwg.mxu0
        %972 = vmatprep.subr.mxu0 0.0
        %973 = vmatpush1.msra.mxu0 %v832
        %974 = vmatprep.subr.mxu0 0.0
        %975 = vmatpush1.msra.mxu0 %v835
        %976 = vmatprep.subr.mxu0 0.0
        %977 = vmatpush1.msra.mxu0 %v838
        %978 = vmatprep.subr.mxu0 0.0
        %979 = vmatpush1.msra.mxu0 %v841
        %980 = vmatprep.subr.mxu0 0.0
        %981 = vmatpush1.msra.mxu0 %v844
        %982 = vmatprep.subr.mxu0 0.0
        %983 = vmatpush1.msra.mxu0 %v847
        %984 = vmatprep.subr.mxu0 0.0
        %985 = vmatpush1.msra.mxu0 %v850
        %986 = vmatprep.subr.mxu0 0.0
        %987 = vmatpush1.msra.mxu0 %v853
        %988 = vmatprep.subr.mxu0 0.0
        %989 = vmatpush1.msra.mxu0 %v856
        %990 = vmatprep.subr.mxu0 0.0
        %991 = vmatpush1.msra.mxu0 %v859
        %992 = vmatprep.subr.mxu0 0.0
        %993 = vmatpush1.msra.mxu0 %v862
        %994 = vmatprep.subr.mxu0 0.0
        %995 = vmatpush1.msra.mxu0 %v865
        %996 = vmatprep.subr.mxu0 0.0
        %997 = vmatpush1.msra.mxu0 %v868
        %998 = vmatprep.subr.mxu0 0.0
        %999 = vmatpush1.msra.mxu0 %v871
        %1000 = vmatprep.subr.mxu0 0.0
        %1001 = vmatpush1.msra.mxu0 %v874
        %1002 = vmatprep.subr.mxu0 0.0
        %1003 = vmatpush1.msra.mxu0 %v877
        %1004 = vmatprep.subr.mxu0 0.0
        %1005 = vmatpush1.msra.mxu0 0.0
        %1006 = vmatprep.subr.mxu0 0.0
        %1007 = vmatpush1.msra.mxu0 0.0
        %1008 = vmatprep.subr.mxu0 0.0
        %1009 = vmatpush1.msra.mxu0 0.0
        %1010 = vmatprep.subr.mxu0 0.0
        %1011 = vmatpush1.msra.mxu0 0.0
        %1012 = vmatprep.subr.mxu0 0.0
        %1013 = vmatpush1.msra.mxu0 0.0
        %1014 = vmatprep.subr.mxu0 0.0
        %1015 = vmatpush1.msra.mxu0 0.0
        %1016 = vmatprep.subr.mxu0 0.0
        %1017 = vmatpush1.msra.mxu0 0.0
        %1018 = vmatprep.subr.mxu0 0.0
        %1019 = vmatpush1.msra.mxu0 0.0
        %1020 = vmatprep.subr.mxu0 0.0
        %1021 = vmatpush1.msra.mxu0 0.0
        %1022 = vmatprep.subr.mxu0 0.0
        %1023 = vmatpush1.msra.mxu0 0.0
        %1024 = vmatprep.subr.mxu0 0.0
        %1025 = vmatpush1.msra.mxu0 0.0
        %1026 = vmatprep.subr.mxu0 0.0
        %1027 = vmatpush1.msra.mxu0 0.0
        %1028 = vmatprep.subr.mxu0 0.0
        %1029 = vmatpush1.msra.mxu0 0.0
        %1030 = vmatprep.subr.mxu0 0.0
        %1031 = vmatpush1.msra.mxu0 0.0
        %1032 = vmatprep.subr.mxu0 0.0
        %1033 = vmatpush1.msra.mxu0 0.0
        %1034 = vmatprep.subr.mxu0 0.0
        %1035 = vmatpush1.msra.mxu0 0.0
        %1036 = vmatprep.mubr.f32.mxu0 0.0
        %1037 = vmatmul.mubr.f32.gmra.mrb[0].mxu0 %v828
        %v1038 = vpop.f32.mrb[0].mxu0
        %v1039 = vadd.f32 %v891, %v1038
        %v1040 = vpop.f32.mrb[0].mxu0
        %1041 = vmatprep.mubr.f32.mxu0 0.0
        %1042 = vmatmul.mubr.f32.gmra.mrb[0].mxu0 %v829
        %v1043 = vpop.f32.mrb[0].mxu0
        %v1044 = vadd.f32 %v891, %v1043
        %v1045 = vpop.f32.mrb[0].mxu0
        %1046 = vdwg.mxu0
        %v1047 = vld [vmem:[%s3] sm:$0x3]
        %vm1048 = vcmask 523264
        %v1050 = vsel %vm1048, %v962, 0
        %v1053 = vsel %vm1048, %v964, 0
        %1055 = vmatprep.subr.mxu0 0.0
        %1056 = vmatpush1.xpose.msra.mxu0 %v1053
        %1057 = vmatprep.subr.mxu0 0.0
        %1058 = vmatpush1.xpose.msra.mxu0 0.0
        %1059 = vmatprep.subr.mxu0 0.0
        %1060 = vmatpush1.xpose.msra.mxu0 0.0
        %1061 = vmatprep.subr.mxu0 0.0
        %1062 = vmatpush1.xpose.msra.mxu0 0.0
        %1063 = vmatprep.subr.mxu0 0.0
        %1064 = vmatpush1.xpose.msra.mxu0 0.0
        %1065 = vmatprep.subr.mxu0 0.0
        %1066 = vmatpush1.xpose.msra.mxu0 0.0
        %1067 = vmatprep.subr.mxu0 0.0
        %1068 = vmatpush1.xpose.msra.mxu0 0.0
        %1069 = vmatprep.subr.mxu0 0.0
        %1070 = vmatpush1.xpose.msra.mxu0 0.0
        %1071 = vmatprep.subr.mxu0 0.0
        %1072 = vmatpush1.xpose.msra.mxu0 0.0
        %1073 = vmatprep.subr.mxu0 0.0
        %1074 = vmatpush1.xpose.msra.mxu0 0.0
        %1075 = vmatprep.subr.mxu0 0.0
        %1076 = vmatpush1.xpose.msra.mxu0 0.0
        %1077 = vmatprep.subr.mxu0 0.0
        %1078 = vmatpush1.xpose.msra.mxu0 0.0
        %1079 = vmatprep.subr.mxu0 0.0
        %1080 = vmatpush1.xpose.msra.mxu0 0.0
        %1081 = vmatprep.subr.mxu0 0.0
        %1082 = vmatpush1.xpose.msra.mxu0 0.0
        %1083 = vmatprep.subr.mxu0 0.0
        %1084 = vmatpush1.xpose.msra.mxu0 0.0
        %1085 = vmatprep.subr.mxu0 0.0
        %1086 = vmatpush1.xpose.msra.mxu0 0.0
        %1087 = vmatprep.subr.mxu0 0.0
        %1088 = vmatpush1.xpose.msra.mxu0 0.0
        %1089 = vmatprep.subr.mxu0 0.0
        %1090 = vmatpush1.xpose.msra.mxu0 0.0
        %1091 = vmatprep.subr.mxu0 0.0
        %1092 = vmatpush1.xpose.msra.mxu0 0.0
        %1093 = vmatprep.subr.mxu0 0.0
        %1094 = vmatpush1.xpose.msra.mxu0 0.0
        %1095 = vmatprep.subr.mxu0 0.0
        %1096 = vmatpush1.xpose.msra.mxu0 0.0
        %1097 = vmatprep.subr.mxu0 0.0
        %1098 = vmatpush1.xpose.msra.mxu0 0.0
        %1099 = vmatprep.subr.mxu0 0.0
        %1100 = vmatpush1.xpose.msra.mxu0 0.0
        %1101 = vmatprep.subr.mxu0 0.0
        %1102 = vmatpush1.xpose.msra.mxu0 0.0
        %1103 = vmatprep.subr.mxu0 0.0
        %1104 = vmatpush1.xpose.msra.mxu0 0.0
        %1105 = vmatprep.subr.mxu0 0.0
        %1106 = vmatpush1.xpose.msra.mxu0 0.0
        %1107 = vmatprep.subr.mxu0 0.0
        %1108 = vmatpush1.xpose.msra.mxu0 0.0
        %1109 = vmatprep.subr.mxu0 0.0
        %1110 = vmatpush1.xpose.msra.mxu0 0.0
        %1111 = vmatprep.subr.mxu0 0.0
        %1112 = vmatpush1.xpose.msra.mxu0 0.0
        %1113 = vmatprep.subr.mxu0 0.0
        %1114 = vmatpush1.xpose.msra.mxu0 0.0
        %1115 = vmatprep.subr.mxu0 0.0
        %1116 = vmatpush1.xpose.msra.mxu0 0.0
        %1117 = vmatprep.subr.mxu0 0.0
        %1118 = vmatpush1.xpose.msra.mxu0 0.0
        %1119 = vmatprep.mubr.f32.mxu0 0.0
        %1120 = vmatmul.mubr.f32.gmra.mrb[0].mxu0 %v1050
        %v1121 = vpop.f32.mrb[0].mxu0
        %v1122 = vadd.f32 0.0, %v1121
        %v1123 = vpop.f32.mrb[0].mxu0
        %1124 = vdwg.mxu0
        %v1125 = vmul.f32 %v1122, 0.125
        %v1126 = vlaneseq
        %v1127 = vshrl.u32 %v1126, 7
        %v1128 = vsub.s32 0, %v1127
        %v1129 = vrot.slane %v1047, %v1128
        %v1130 = vadd.f32 %v1125, %v1129
        %vm1131 = vcmask 64512
        %v1132 = vsel %vm1131, %v1130, -inf
        %1133 = vmax.xlane.f32.xlu0 %v1132
        %v1134 = vpop.xlane.xlu0 %1133
        %v1135 = vsub.f32 %v1130, %v1134
        %v1136 = vmul.f32 %v1135, 1.442695
        %v1137 = vpow.pop %v1136
        %v1138 = vsel %vm1131, %v1137, 0.0
        %1139 = vadd.xlane.f32.xlu0 %v1138
        %v1140 = vpop.xlane.xlu0 %1139
        %v1141 = vrcp.pop %v1140
        %v1142 = vmul.f32 %v1137, %v1141
        %v1144 = vsel %vm1131, %v1142, 0
        %1146 = vmatprep.subr.mxu0 0.0
        %1147 = vmatpush1.msra.mxu0 %v1039
        %1148 = vmatprep.subr.mxu0 0.0
        %1149 = vmatpush1.msra.mxu0 0.0
        %1150 = vmatprep.subr.mxu0 0.0
        %1151 = vmatpush1.msra.mxu0 0.0
        %1152 = vmatprep.subr.mxu0 0.0
        %1153 = vmatpush1.msra.mxu0 0.0
        %1154 = vmatprep.subr.mxu0 0.0
        %1155 = vmatpush1.msra.mxu0 0.0
        %1156 = vmatprep.subr.mxu0 0.0
        %1157 = vmatpush1.msra.mxu0 0.0
        %1158 = vmatprep.subr.mxu0 0.0
        %1159 = vmatpush1.msra.mxu0 0.0
        %1160 = vmatprep.subr.mxu0 0.0
        %1161 = vmatpush1.msra.mxu0 0.0
        %1162 = vmatprep.subr.mxu0 0.0
        %1163 = vmatpush1.msra.mxu0 0.0
        %1164 = vmatprep.subr.mxu0 0.0
        %1165 = vmatpush1.msra.mxu0 0.0
        %1166 = vmatprep.subr.mxu0 0.0
        %1167 = vmatpush1.msra.mxu0 0.0
        %1168 = vmatprep.subr.mxu0 0.0
        %1169 = vmatpush1.msra.mxu0 0.0
        %1170 = vmatprep.subr.mxu0 0.0
        %1171 = vmatpush1.msra.mxu0 0.0
        %1172 = vmatprep.subr.mxu0 0.0
        %1173 = vmatpush1.msra.mxu0 0.0
        %1174 = vmatprep.subr.mxu0 0.0
        %1175 = vmatpush1.msra.mxu0 0.0
        %1176 = vmatprep.subr.mxu0 0.0
        %1177 = vmatpush1.msra.mxu0 0.0
        %1178 = vmatprep.subr.mxu0 0.0
        %1179 = vmatpush1.msra.mxu0 0.0
        %1180 = vmatprep.subr.mxu0 0.0
        %1181 = vmatpush1.msra.mxu0 0.0
        %1182 = vmatprep.subr.mxu0 0.0
        %1183 = vmatpush1.msra.mxu0 0.0
        %1184 = vmatprep.subr.mxu0 0.0
        %1185 = vmatpush1.msra.mxu0 0.0
        %1186 = vmatprep.subr.mxu0 0.0
        %1187 = vmatpush1.msra.mxu0 0.0
        %1188 = vmatprep.subr.mxu0 0.0
        %1189 = vmatpush1.msra.mxu0 0.0
        %1190 = vmatprep.subr.mxu0 0.0
        %1191 = vmatpush1.msra.mxu0 0.0
        %1192 = vmatprep.subr.mxu0 0.0
        %1193 = vmatpush1.msra.mxu0 0.0
        %1194 = vmatprep.subr.mxu0 0.0
        %1195 = vmatpush1.msra.mxu0 0.0
        %1196 = vmatprep.subr.mxu0 0.0
        %1197 = vmatpush1.msra.mxu0 0.0
        %1198 = vmatprep.subr.mxu0 0.0
        %1199 = vmatpush1.msra.mxu0 0.0
        %1200 = vmatprep.subr.mxu0 0.0
        %1201 = vmatpush1.msra.mxu0 0.0
        %1202 = vmatprep.subr.mxu0 0.0
        %1203 = vmatpush1.msra.mxu0 0.0
        %1204 = vmatprep.subr.mxu0 0.0
        %1205 = vmatpush1.msra.mxu0 0.0
        %1206 = vmatprep.subr.mxu0 0.0
        %1207 = vmatpush1.msra.mxu0 0.0
        %1208 = vmatprep.subr.mxu0 0.0
        %1209 = vmatpush1.msra.mxu0 0.0
        %1210 = vmatprep.mubr.f32.mxu0 0.0
        %1211 = vmatmul.mubr.f32.gmra.mrb[0].mxu0 %v1144
        %v1212 = vpop.f32.mrb[0].mxu0
        %v1213 = vadd.f32 0.0, %v1212
        %v1214 = vpop.f32.mrb[0].mxu0
        %1215 = vdwg.mxu0
        %1216 = vrot.lane.b32.xlu0 %v962, 64
        %v1217 = vpop.permute.xlu0 %1216
        %1218 = vrot.lane.b32.xlu0 %v964, 64
        %v1219 = vpop.permute.xlu0 %1218
        %v1220 = vsel %vm1048, %v1217, 0
        %v1222 = vsel %vm1048, %v1219, 0
        %1224 = vmatprep.subr.mxu0 0.0
        %1225 = vmatpush1.xpose.msra.mxu0 %v1222
        %1226 = vmatprep.subr.mxu0 0.0
        %1227 = vmatpush1.xpose.msra.mxu0 0.0
        %1228 = vmatprep.subr.mxu0 0.0
        %1229 = vmatpush1.xpose.msra.mxu0 0.0
        %1230 = vmatprep.subr.mxu0 0.0
        %1231 = vmatpush1.xpose.msra.mxu0 0.0
        %1232 = vmatprep.subr.mxu0 0.0
        %1233 = vmatpush1.xpose.msra.mxu0 0.0
        %1234 = vmatprep.subr.mxu0 0.0
        %1235 = vmatpush1.xpose.msra.mxu0 0.0
        %1236 = vmatprep.subr.mxu0 0.0
        %1237 = vmatpush1.xpose.msra.mxu0 0.0
        %1238 = vmatprep.subr.mxu0 0.0
        %1239 = vmatpush1.xpose.msra.mxu0 0.0
        %1240 = vmatprep.subr.mxu0 0.0
        %1241 = vmatpush1.xpose.msra.mxu0 0.0
        %1242 = vmatprep.subr.mxu0 0.0
        %1243 = vmatpush1.xpose.msra.mxu0 0.0
        %1244 = vmatprep.subr.mxu0 0.0
        %1245 = vmatpush1.xpose.msra.mxu0 0.0
        %1246 = vmatprep.subr.mxu0 0.0
        %1247 = vmatpush1.xpose.msra.mxu0 0.0
        %1248 = vmatprep.subr.mxu0 0.0
        %1249 = vmatpush1.xpose.msra.mxu0 0.0
        %1250 = vmatprep.subr.mxu0 0.0
        %1251 = vmatpush1.xpose.msra.mxu0 0.0
        %1252 = vmatprep.subr.mxu0 0.0
        %1253 = vmatpush1.xpose.msra.mxu0 0.0
        %1254 = vmatprep.subr.mxu0 0.0
        %1255 = vmatpush1.xpose.msra.mxu0 0.0
        %1256 = vmatprep.subr.mxu0 0.0
        %1257 = vmatpush1.xpose.msra.mxu0 0.0
        %1258 = vmatprep.subr.mxu0 0.0
        %1259 = vmatpush1.xpose.msra.mxu0 0.0
        %1260 = vmatprep.subr.mxu0 0.0
        %1261 = vmatpush1.xpose.msra.mxu0 0.0
        %1262 = vmatprep.subr.mxu0 0.0
        %1263 = vmatpush1.xpose.msra.mxu0 0.0
        %1264 = vmatprep.subr.mxu0 0.0
        %1265 = vmatpush1.xpose.msra.mxu0 0.0
        %1266 = vmatprep.subr.mxu0 0.0
        %1267 = vmatpush1.xpose.msra.mxu0 0.0
        %1268 = vmatprep.subr.mxu0 0.0
        %1269 = vmatpush1.xpose.msra.mxu0 0.0
        %1270 = vmatprep.subr.mxu0 0.0
        %1271 = vmatpush1.xpose.msra.mxu0 0.0
        %1272 = vmatprep.subr.mxu0 0.0
        %1273 = vmatpush1.xpose.msra.mxu0 0.0
        %1274 = vmatprep.subr.mxu0 0.0
        %1275 = vmatpush1.xpose.msra.mxu0 0.0
        %1276 = vmatprep.subr.mxu0 0.0
        %1277 = vmatpush1.xpose.msra.mxu0 0.0
        %1278 = vmatprep.subr.mxu0 0.0
        %1279 = vmatpush1.xpose.msra.mxu0 0.0
        %1280 = vmatprep.subr.mxu0 0.0
        %1281 = vmatpush1.xpose.msra.mxu0 0.0
        %1282 = vmatprep.subr.mxu0 0.0
        %1283 = vmatpush1.xpose.msra.mxu0 0.0
        %1284 = vmatprep.subr.mxu0 0.0
        %1285 = vmatpush1.xpose.msra.mxu0 0.0
        %1286 = vmatprep.subr.mxu0 0.0
        %1287 = vmatpush1.xpose.msra.mxu0 0.0
        %1288 = vmatprep.mubr.f32.mxu0 0.0
        %1289 = vmatmul.mubr.f32.gmra.mrb[0].mxu0 %v1220
        %v1290 = vpop.f32.mrb[0].mxu0
        %v1291 = vadd.f32 0.0, %v1290
        %v1292 = vpop.f32.mrb[0].mxu0
        %1293 = vdwg.mxu0
        %v1294 = vmul.f32 %v1291, 0.125
        %v1295 = vadd.f32 %v1294, %v1129
        %v1296 = vsel %vm1131, %v1295, -inf
        %1297 = vmax.xlane.f32.xlu0 %v1296
        %v1298 = vpop.xlane.xlu0 %1297
        %v1299 = vsub.f32 %v1295, %v1298
        %v1300 = vmul.f32 %v1299, 1.442695
        %v1301 = vpow.pop %v1300
        %v1302 = vsel %vm1131, %v1301, 0.0
        %1303 = vadd.xlane.f32.xlu0 %v1302
        %v1304 = vpop.xlane.xlu0 %1303
        %v1305 = vrcp.pop %v1304
        %v1306 = vmul.f32 %v1301, %v1305
        %1308 = vrot.lane.b32.xlu0 %v1039, 64
        %v1309 = vpop.permute.xlu0 %1308
        %v1312 = vsel %vm1131, %v1306, 0
        %1314 = vmatprep.subr.mxu0 0.0
        %1315 = vmatpush1.msra.mxu0 %v1309
        %1316 = vmatprep.subr.mxu0 0.0
        %1317 = vmatpush1.msra.mxu0 0.0
        %1318 = vmatprep.subr.mxu0 0.0
        %1319 = vmatpush1.msra.mxu0 0.0
        %1320 = vmatprep.subr.mxu0 0.0
        %1321 = vmatpush1.msra.mxu0 0.0
        %1322 = vmatprep.subr.mxu0 0.0
        %1323 = vmatpush1.msra.mxu0 0.0
        %1324 = vmatprep.subr.mxu0 0.0
        %1325 = vmatpush1.msra.mxu0 0.0
        %1326 = vmatprep.subr.mxu0 0.0
        %1327 = vmatpush1.msra.mxu0 0.0
        %1328 = vmatprep.subr.mxu0 0.0
        %1329 = vmatpush1.msra.mxu0 0.0
        %1330 = vmatprep.subr.mxu0 0.0
        %1331 = vmatpush1.msra.mxu0 0.0
        %1332 = vmatprep.subr.mxu0 0.0
        %1333 = vmatpush1.msra.mxu0 0.0
        %1334 = vmatprep.subr.mxu0 0.0
        %1335 = vmatpush1.msra.mxu0 0.0
        %1336 = vmatprep.subr.mxu0 0.0
        %1337 = vmatpush1.msra.mxu0 0.0
        %1338 = vmatprep.subr.mxu0 0.0
        %1339 = vmatpush1.msra.mxu0 0.0
        %1340 = vmatprep.subr.mxu0 0.0
        %1341 = vmatpush1.msra.mxu0 0.0
        %1342 = vmatprep.subr.mxu0 0.0
        %1343 = vmatpush1.msra.mxu0 0.0
        %1344 = vmatprep.subr.mxu0 0.0
        %1345 = vmatpush1.msra.mxu0 0.0
        %1346 = vmatprep.subr.mxu0 0.0
        %1347 = vmatpush1.msra.mxu0 0.0
        %1348 = vmatprep.subr.mxu0 0.0
        %1349 = vmatpush1.msra.mxu0 0.0
        %1350 = vmatprep.subr.mxu0 0.0
        %1351 = vmatpush1.msra.mxu0 0.0
        %1352 = vmatprep.subr.mxu0 0.0
        %1353 = vmatpush1.msra.mxu0 0.0
        %1354 = vmatprep.subr.mxu0 0.0
        %1355 = vmatpush1.msra.mxu0 0.0
        %1356 = vmatprep.subr.mxu0 0.0
        %1357 = vmatpush1.msra.mxu0 0.0
        %1358 = vmatprep.subr.mxu0 0.0
        %1359 = vmatpush1.msra.mxu0 0.0
        %1360 = vmatprep.subr.mxu0 0.0
        %1361 = vmatpush1.msra.mxu0 0.0
        %1362 = vmatprep.subr.mxu0 0.0
        %1363 = vmatpush1.msra.mxu0 0.0
        %1364 = vmatprep.subr.mxu0 0.0
        %1365 = vmatpush1.msra.mxu0 0.0
        %1366 = vmatprep.subr.mxu0 0.0
        %1367 = vmatpush1.msra.mxu0 0.0
        %1368 = vmatprep.subr.mxu0 0.0
        %1369 = vmatpush1.msra.mxu0 0.0
        %1370 = vmatprep.subr.mxu0 0.0
        %1371 = vmatpush1.msra.mxu0 0.0
        %1372 = vmatprep.subr.mxu0 0.0
        %1373 = vmatpush1.msra.mxu0 0.0
        %1374 = vmatprep.subr.mxu0 0.0
        %1375 = vmatpush1.msra.mxu0 0.0
        %1376 = vmatprep.subr.mxu0 0.0
        %1377 = vmatpush1.msra.mxu0 0.0
        %1378 = vmatprep.mubr.f32.mxu0 0.0
        %1379 = vmatmul.mubr.f32.gmra.mrb[0].mxu0 %v1312
        %v1380 = vpop.f32.mrb[0].mxu0
        %v1381 = vadd.f32 0.0, %v1380
        %v1382 = vpop.f32.mrb[0].mxu0
        %1383 = vdwg.mxu0
        %1385 = vrot.lane.b32.xlu0 %v1381, 64
        %v1386 = vpop.permute.xlu0 %1385
        %v1388 = vsel %vm1048, %v1213, %v1386
        %v1390 = vsel %vm1048, %v968, 0
        %v1393 = vsel %vm1048, %v970, 0
        %1395 = vmatprep.subr.mxu0 0.0
        %1396 = vmatpush1.xpose.msra.mxu0 %v1393
        %1397 = vmatprep.subr.mxu0 0.0
        %1398 = vmatpush1.xpose.msra.mxu0 0.0
        %1399 = vmatprep.subr.mxu0 0.0
        %1400 = vmatpush1.xpose.msra.mxu0 0.0
        %1401 = vmatprep.subr.mxu0 0.0
        %1402 = vmatpush1.xpose.msra.mxu0 0.0
        %1403 = vmatprep.subr.mxu0 0.0
        %1404 = vmatpush1.xpose.msra.mxu0 0.0
        %1405 = vmatprep.subr.mxu0 0.0
        %1406 = vmatpush1.xpose.msra.mxu0 0.0
        %1407 = vmatprep.subr.mxu0 0.0
        %1408 = vmatpush1.xpose.msra.mxu0 0.0
        %1409 = vmatprep.subr.mxu0 0.0
        %1410 = vmatpush1.xpose.msra.mxu0 0.0
        %1411 = vmatprep.subr.mxu0 0.0
        %1412 = vmatpush1.xpose.msra.mxu0 0.0
        %1413 = vmatprep.subr.mxu0 0.0
        %1414 = vmatpush1.xpose.msra.mxu0 0.0
        %1415 = vmatprep.subr.mxu0 0.0
        %1416 = vmatpush1.xpose.msra.mxu0 0.0
        %1417 = vmatprep.subr.mxu0 0.0
        %1418 = vmatpush1.xpose.msra.mxu0 0.0
        %1419 = vmatprep.subr.mxu0 0.0
        %1420 = vmatpush1.xpose.msra.mxu0 0.0
        %1421 = vmatprep.subr.mxu0 0.0
        %1422 = vmatpush1.xpose.msra.mxu0 0.0
        %1423 = vmatprep.subr.mxu0 0.0
        %1424 = vmatpush1.xpose.msra.mxu0 0.0
        %1425 = vmatprep.subr.mxu0 0.0
        %1426 = vmatpush1.xpose.msra.mxu0 0.0
        %1427 = vmatprep.subr.mxu0 0.0
        %1428 = vmatpush1.xpose.msra.mxu0 0.0
        %1429 = vmatprep.subr.mxu0 0.0
        %1430 = vmatpush1.xpose.msra.mxu0 0.0
        %1431 = vmatprep.subr.mxu0 0.0
        %1432 = vmatpush1.xpose.msra.mxu0 0.0
        %1433 = vmatprep.subr.mxu0 0.0
        %1434 = vmatpush1.xpose.msra.mxu0 0.0
        %1435 = vmatprep.subr.mxu0 0.0
        %1436 = vmatpush1.xpose.msra.mxu0 0.0
        %1437 = vmatprep.subr.mxu0 0.0
        %1438 = vmatpush1.xpose.msra.mxu0 0.0
        %1439 = vmatprep.subr.mxu0 0.0
        %1440 = vmatpush1.xpose.msra.mxu0 0.0
        %1441 = vmatprep.subr.mxu0 0.0
        %1442 = vmatpush1.xpose.msra.mxu0 0.0
        %1443 = vmatprep.subr.mxu0 0.0
        %1444 = vmatpush1.xpose.msra.mxu0 0.0
        %1445 = vmatprep.subr.mxu0 0.0
        %1446 = vmatpush1.xpose.msra.mxu0 0.0
        %1447 = vmatprep.subr.mxu0 0.0
        %1448 = vmatpush1.xpose.msra.mxu0 0.0
        %1449 = vmatprep.subr.mxu0 0.0
        %1450 = vmatpush1.xpose.msra.mxu0 0.0
        %1451 = vmatprep.subr.mxu0 0.0
        %1452 = vmatpush1.xpose.msra.mxu0 0.0
        %1453 = vmatprep.subr.mxu0 0.0
        %1454 = vmatpush1.xpose.msra.mxu0 0.0
        %1455 = vmatprep.subr.mxu0 0.0
        %1456 = vmatpush1.xpose.msra.mxu0 0.0
        %1457 = vmatprep.subr.mxu0 0.0
        %1458 = vmatpush1.xpose.msra.mxu0 0.0
        %1459 = vmatprep.mubr.f32.mxu0 0.0
        %1460 = vmatmul.mubr.f32.gmra.mrb[0].mxu0 %v1390
        %v1461 = vpop.f32.mrb[0].mxu0
        %v1462 = vadd.f32 0.0, %v1461
        %v1463 = vpop.f32.mrb[0].mxu0
        %1464 = vdwg.mxu0
        %v1465 = vmul.f32 %v1462, 0.125
        %v1466 = vlaneseq
        %v1467 = vshrl.u32 %v1466, 7
        %v1468 = vsub.s32 1, %v1467
        %v1469 = vrot.slane %v1047, %v1468
        %v1470 = vadd.f32 %v1465, %v1469
        %v1471 = vsel %vm1131, %v1470, -inf
        %1472 = vmax.xlane.f32.xlu0 %v1471
        %v1473 = vpop.xlane.xlu0 %1472
        %v1474 = vsub.f32 %v1470, %v1473
        %v1475 = vmul.f32 %v1474, 1.442695
        %v1476 = vpow.pop %v1475
        %v1477 = vsel %vm1131, %v1476, 0.0
        %1478 = vadd.xlane.f32.xlu0 %v1477
        %v1479 = vpop.xlane.xlu0 %1478
        %v1480 = vrcp.pop %v1479
        %v1481 = vmul.f32 %v1476, %v1480
        %v1483 = vsel %vm1131, %v1481, 0
        %1485 = vmatprep.subr.mxu0 0.0
        %1486 = vmatpush1.msra.mxu0 %v1044
        %1487 = vmatprep.subr.mxu0 0.0
        %1488 = vmatpush1.msra.mxu0 0.0
        %1489 = vmatprep.subr.mxu0 0.0
        %1490 = vmatpush1.msra.mxu0 0.0
        %1491 = vmatprep.subr.mxu0 0.0
        %1492 = vmatpush1.msra.mxu0 0.0
        %1493 = vmatprep.subr.mxu0 0.0
        %1494 = vmatpush1.msra.mxu0 0.0
        %1495 = vmatprep.subr.mxu0 0.0
        %1496 = vmatpush1.msra.mxu0 0.0
        %1497 = vmatprep.subr.mxu0 0.0
        %1498 = vmatpush1.msra.mxu0 0.0
        %1499 = vmatprep.subr.mxu0 0.0
        %1500 = vmatpush1.msra.mxu0 0.0
        %1501 = vmatprep.subr.mxu0 0.0
        %1502 = vmatpush1.msra.mxu0 0.0
        %1503 = vmatprep.subr.mxu0 0.0
        %1504 = vmatpush1.msra.mxu0 0.0
        %1505 = vmatprep.subr.mxu0 0.0
        %1506 = vmatpush1.msra.mxu0 0.0
        %1507 = vmatprep.subr.mxu0 0.0
        %1508 = vmatpush1.msra.mxu0 0.0
        %1509 = vmatprep.subr.mxu0 0.0
        %1510 = vmatpush1.msra.mxu0 0.0
        %1511 = vmatprep.subr.mxu0 0.0
        %1512 = vmatpush1.msra.mxu0 0.0
        %1513 = vmatprep.subr.mxu0 0.0
        %1514 = vmatpush1.msra.mxu0 0.0
        %1515 = vmatprep.subr.mxu0 0.0
        %1516 = vmatpush1.msra.mxu0 0.0
        %1517 = vmatprep.subr.mxu0 0.0
        %1518 = vmatpush1.msra.mxu0 0.0
        %1519 = vmatprep.subr.mxu0 0.0
        %1520 = vmatpush1.msra.mxu0 0.0
        %1521 = vmatprep.subr.mxu0 0.0
        %1522 = vmatpush1.msra.mxu0 0.0
        %1523 = vmatprep.subr.mxu0 0.0
        %1524 = vmatpush1.msra.mxu0 0.0
        %1525 = vmatprep.subr.mxu0 0.0
        %1526 = vmatpush1.msra.mxu0 0.0
        %1527 = vmatprep.subr.mxu0 0.0
        %1528 = vmatpush1.msra.mxu0 0.0
        %1529 = vmatprep.subr.mxu0 0.0
        %1530 = vmatpush1.msra.mxu0 0.0
        %1531 = vmatprep.subr.mxu0 0.0
        %1532 = vmatpush1.msra.mxu0 0.0
        %1533 = vmatprep.subr.mxu0 0.0
        %1534 = vmatpush1.msra.mxu0 0.0
        %1535 = vmatprep.subr.mxu0 0.0
        %1536 = vmatpush1.msra.mxu0 0.0
        %1537 = vmatprep.subr.mxu0 0.0
        %1538 = vmatpush1.msra.mxu0 0.0
        %1539 = vmatprep.subr.mxu0 0.0
        %1540 = vmatpush1.msra.mxu0 0.0
        %1541 = vmatprep.subr.mxu0 0.0
        %1542 = vmatpush1.msra.mxu0 0.0
        %1543 = vmatprep.subr.mxu0 0.0
        %1544 = vmatpush1.msra.mxu0 0.0
        %1545 = vmatprep.subr.mxu0 0.0
        %1546 = vmatpush1.msra.mxu0 0.0
        %1547 = vmatprep.subr.mxu0 0.0
        %1548 = vmatpush1.msra.mxu0 0.0
        %1549 = vmatprep.mubr.f32.mxu0 0.0
        %1550 = vmatmul.mubr.f32.gmra.mrb[0].mxu0 %v1483
        %v1551 = vpop.f32.mrb[0].mxu0
        %v1552 = vadd.f32 0.0, %v1551
        %v1553 = vpop.f32.mrb[0].mxu0
        %1554 = vdwg.mxu0
        %1555 = vrot.lane.b32.xlu0 %v968, 64
        %v1556 = vpop.permute.xlu0 %1555
        %1557 = vrot.lane.b32.xlu0 %v970, 64
        %v1558 = vpop.permute.xlu0 %1557
        %v1559 = vsel %vm1048, %v1556, 0
        %v1561 = vsel %vm1048, %v1558, 0
        %1563 = vmatprep.subr.mxu0 0.0
        %1564 = vmatpush1.xpose.msra.mxu0 %v1561
        %1565 = vmatprep.subr.mxu0 0.0
        %1566 = vmatpush1.xpose.msra.mxu0 0.0
        %1567 = vmatprep.subr.mxu0 0.0
        %1568 = vmatpush1.xpose.msra.mxu0 0.0
        %1569 = vmatprep.subr.mxu0 0.0
        %1570 = vmatpush1.xpose.msra.mxu0 0.0
        %1571 = vmatprep.subr.mxu0 0.0
        %1572 = vmatpush1.xpose.msra.mxu0 0.0
        %1573 = vmatprep.subr.mxu0 0.0
        %1574 = vmatpush1.xpose.msra.mxu0 0.0
        %1575 = vmatprep.subr.mxu0 0.0
        %1576 = vmatpush1.xpose.msra.mxu0 0.0
        %1577 = vmatprep.subr.mxu0 0.0
        %1578 = vmatpush1.xpose.msra.mxu0 0.0
        %1579 = vmatprep.subr.mxu0 0.0
        %1580 = vmatpush1.xpose.msra.mxu0 0.0
        %1581 = vmatprep.subr.mxu0 0.0
        %1582 = vmatpush1.xpose.msra.mxu0 0.0
        %1583 = vmatprep.subr.mxu0 0.0
        %1584 = vmatpush1.xpose.msra.mxu0 0.0
        %1585 = vmatprep.subr.mxu0 0.0
        %1586 = vmatpush1.xpose.msra.mxu0 0.0
        %1587 = vmatprep.subr.mxu0 0.0
        %1588 = vmatpush1.xpose.msra.mxu0 0.0
        %1589 = vmatprep.subr.mxu0 0.0
        %1590 = vmatpush1.xpose.msra.mxu0 0.0
        %1591 = vmatprep.subr.mxu0 0.0
        %1592 = vmatpush1.xpose.msra.mxu0 0.0
        %1593 = vmatprep.subr.mxu0 0.0
        %1594 = vmatpush1.xpose.msra.mxu0 0.0
        %1595 = vmatprep.subr.mxu0 0.0
        %1596 = vmatpush1.xpose.msra.mxu0 0.0
        %1597 = vmatprep.subr.mxu0 0.0
        %1598 = vmatpush1.xpose.msra.mxu0 0.0
        %1599 = vmatprep.subr.mxu0 0.0
        %1600 = vmatpush1.xpose.msra.mxu0 0.0
        %1601 = vmatprep.subr.mxu0 0.0
        %1602 = vmatpush1.xpose.msra.mxu0 0.0
        %1603 = vmatprep.subr.mxu0 0.0
        %1604 = vmatpush1.xpose.msra.mxu0 0.0
        %1605 = vmatprep.subr.mxu0 0.0
        %1606 = vmatpush1.xpose.msra.mxu0 0.0
        %1607 = vmatprep.subr.mxu0 0.0
        %1608 = vmatpush1.xpose.msra.mxu0 0.0
        %1609 = vmatprep.subr.mxu0 0.0
        %1610 = vmatpush1.xpose.msra.mxu0 0.0
        %1611 = vmatprep.subr.mxu0 0.0
        %1612 = vmatpush1.xpose.msra.mxu0 0.0
        %1613 = vmatprep.subr.mxu0 0.0
        %1614 = vmatpush1.xpose.msra.mxu0 0.0
        %1615 = vmatprep.subr.mxu0 0.0
        %1616 = vmatpush1.xpose.msra.mxu0 0.0
        %1617 = vmatprep.subr.mxu0 0.0
        %1618 = vmatpush1.xpose.msra.mxu0 0.0
        %1619 = vmatprep.subr.mxu0 0.0
        %1620 = vmatpush1.xpose.msra.mxu0 0.0
        %1621 = vmatprep.subr.mxu0 0.0
        %1622 = vmatpush1.xpose.msra.mxu0 0.0
        %1623 = vmatprep.subr.mxu0 0.0
        %1624 = vmatpush1.xpose.msra.mxu0 0.0
        %1625 = vmatprep.subr.mxu0 0.0
        %1626 = vmatpush1.xpose.msra.mxu0 0.0
        %1627 = vmatprep.mubr.f32.mxu0 0.0
        %1628 = vmatmul.mubr.f32.gmra.mrb[0].mxu0 %v1559
        %v1629 = vpop.f32.mrb[0].mxu0
        %v1630 = vadd.f32 0.0, %v1629
        %v1631 = vpop.f32.mrb[0].mxu0
        %1632 = vdwg.mxu0
        %v1633 = vmul.f32 %v1630, 0.125
        %v1634 = vadd.f32 %v1633, %v1469
        %v1635 = vsel %vm1131, %v1634, -inf
        %1636 = vmax.xlane.f32.xlu0 %v1635
        %v1637 = vpop.xlane.xlu0 %1636
        %v1638 = vsub.f32 %v1634, %v1637
        %v1639 = vmul.f32 %v1638, 1.442695
        %v1640 = vpow.pop %v1639
        %v1641 = vsel %vm1131, %v1640, 0.0
        %1642 = vadd.xlane.f32.xlu0 %v1641
        %v1643 = vpop.xlane.xlu0 %1642
        %v1644 = vrcp.pop %v1643
        %v1645 = vmul.f32 %v1640, %v1644
        %1647 = vrot.lane.b32.xlu0 %v1044, 64
        %v1648 = vpop.permute.xlu0 %1647
        %v1651 = vsel %vm1131, %v1645, 0
        %1653 = vmatprep.subr.mxu0 0.0
        %1654 = vmatpush1.msra.mxu0 %v1648
        %1655 = vmatprep.subr.mxu0 0.0
        %1656 = vmatpush1.msra.mxu0 0.0
        %1657 = vmatprep.subr.mxu0 0.0
        %1658 = vmatpush1.msra.mxu0 0.0
        %1659 = vmatprep.subr.mxu0 0.0
        %1660 = vmatpush1.msra.mxu0 0.0
        %1661 = vmatprep.subr.mxu0 0.0
        %1662 = vmatpush1.msra.mxu0 0.0
        %1663 = vmatprep.subr.mxu0 0.0
        %1664 = vmatpush1.msra.mxu0 0.0
        %1665 = vmatprep.subr.mxu0 0.0
        %1666 = vmatpush1.msra.mxu0 0.0
        %1667 = vmatprep.subr.mxu0 0.0
        %1668 = vmatpush1.msra.mxu0 0.0
        %1669 = vmatprep.subr.mxu0 0.0
        %1670 = vmatpush1.msra.mxu0 0.0
        %1671 = vmatprep.subr.mxu0 0.0
        %1672 = vmatpush1.msra.mxu0 0.0
        %1673 = vmatprep.subr.mxu0 0.0
        %1674 = vmatpush1.msra.mxu0 0.0
        %1675 = vmatprep.subr.mxu0 0.0
        %1676 = vmatpush1.msra.mxu0 0.0
        %1677 = vmatprep.subr.mxu0 0.0
        %1678 = vmatpush1.msra.mxu0 0.0
        %1679 = vmatprep.subr.mxu0 0.0
        %1680 = vmatpush1.msra.mxu0 0.0
        %1681 = vmatprep.subr.mxu0 0.0
        %1682 = vmatpush1.msra.mxu0 0.0
        %1683 = vmatprep.subr.mxu0 0.0
        %1684 = vmatpush1.msra.mxu0 0.0
        %1685 = vmatprep.subr.mxu0 0.0
        %1686 = vmatpush1.msra.mxu0 0.0
        %1687 = vmatprep.subr.mxu0 0.0
        %1688 = vmatpush1.msra.mxu0 0.0
        %1689 = vmatprep.subr.mxu0 0.0
        %1690 = vmatpush1.msra.mxu0 0.0
        %1691 = vmatprep.subr.mxu0 0.0
        %1692 = vmatpush1.msra.mxu0 0.0
        %1693 = vmatprep.subr.mxu0 0.0
        %1694 = vmatpush1.msra.mxu0 0.0
        %1695 = vmatprep.subr.mxu0 0.0
        %1696 = vmatpush1.msra.mxu0 0.0
        %1697 = vmatprep.subr.mxu0 0.0
        %1698 = vmatpush1.msra.mxu0 0.0
        %1699 = vmatprep.subr.mxu0 0.0
        %1700 = vmatpush1.msra.mxu0 0.0
        %1701 = vmatprep.subr.mxu0 0.0
        %1702 = vmatpush1.msra.mxu0 0.0
        %1703 = vmatprep.subr.mxu0 0.0
        %1704 = vmatpush1.msra.mxu0 0.0
        %1705 = vmatprep.subr.mxu0 0.0
        %1706 = vmatpush1.msra.mxu0 0.0
        %1707 = vmatprep.subr.mxu0 0.0
        %1708 = vmatpush1.msra.mxu0 0.0
        %1709 = vmatprep.subr.mxu0 0.0
        %1710 = vmatpush1.msra.mxu0 0.0
        %1711 = vmatprep.subr.mxu0 0.0
        %1712 = vmatpush1.msra.mxu0 0.0
        %1713 = vmatprep.subr.mxu0 0.0
        %1714 = vmatpush1.msra.mxu0 0.0
        %1715 = vmatprep.subr.mxu0 0.0
        %1716 = vmatpush1.msra.mxu0 0.0
        %1717 = vmatprep.mubr.f32.mxu0 0.0
        %1718 = vmatmul.mubr.f32.gmra.mrb[0].mxu0 %v1651
        %v1719 = vpop.f32.mrb[0].mxu0
        %v1720 = vadd.f32 0.0, %v1719
        %v1721 = vpop.f32.mrb[0].mxu0
        %1722 = vdwg.mxu0
        %1724 = vrot.lane.b32.xlu0 %v1720, 64
        %v1725 = vpop.permute.xlu0 %1724
        %v1727 = vsel %vm1048, %v1552, %v1725
        %v1728 = vld [vmem:[%s751] sm:$0xff]
        %v1729 = vld [vmem:[%s751 + $0x8] sm:$0xff]
        %v1730 = vld [vmem:[%s751 + $0x10] sm:$0xff]
        %v1731 = vld [vmem:[%s751 + $0x18] sm:$0xff]
        %v1732 = vld [vmem:[%s751 + $0x20] sm:$0xff]
        %v1733 = vld [vmem:[%s751 + $0x28] sm:$0xff]
        %v1734 = vld [vmem:[%s751 + $0x30] sm:$0xff]
        %v1735 = vld [vmem:[%s751 + $0x38] sm:$0xff]
        %v1736 = vld [vmem:[%s751 + $0x40] sm:$0xff]
        %v1737 = vld [vmem:[%s751 + $0x48] sm:$0xff]
        %v1738 = vld [vmem:[%s751 + $0x50] sm:$0xff]
        %v1739 = vld [vmem:[%s751 + $0x58] sm:$0xff]
        %v1740 = vld [vmem:[%s751 + $0x60] sm:$0xff]
        %v1741 = vld [vmem:[%s751 + $0x68] sm:$0xff]
        %v1742 = vld [vmem:[%s751 + $0x70] sm:$0xff]
        %v1743 = vld [vmem:[%s751 + $0x78] sm:$0xff]
        %v1744 = vld [vmem:[%s754] sm:$0x1]
        %v1746 = vlaneseq
        %v1747 = vshrl.u32 %v1746, 7
        %v1748 = vsub.s32 0, %v1747
        %v1749 = vrot.slane %v1744, %v1748
        %1751 = vmatprep.subr.mxu0 0.0
        %1752 = vmatpush1.msra.mxu0 %v1728
        %1753 = vmatprep.subr.mxu0 0.0
        %1754 = vmatpush1.msra.mxu0 %v1729
        %1755 = vmatprep.subr.mxu0 0.0
        %1756 = vmatpush1.msra.mxu0 %v1730
        %1757 = vmatprep.subr.mxu0 0.0
        %1758 = vmatpush1.msra.mxu0 %v1731
        %1759 = vmatprep.subr.mxu0 0.0
        %1760 = vmatpush1.msra.mxu0 %v1732
        %1761 = vmatprep.subr.mxu0 0.0
        %1762 = vmatpush1.msra.mxu0 %v1733
        %1763 = vmatprep.subr.mxu0 0.0
        %1764 = vmatpush1.msra.mxu0 %v1734
        %1765 = vmatprep.subr.mxu0 0.0
        %1766 = vmatpush1.msra.mxu0 %v1735
        %1767 = vmatprep.subr.mxu0 0.0
        %1768 = vmatpush1.msra.mxu0 %v1736
        %1769 = vmatprep.subr.mxu0 0.0
        %1770 = vmatpush1.msra.mxu0 %v1737
        %1771 = vmatprep.subr.mxu0 0.0
        %1772 = vmatpush1.msra.mxu0 %v1738
        %1773 = vmatprep.subr.mxu0 0.0
        %1774 = vmatpush1.msra.mxu0 %v1739
        %1775 = vmatprep.subr.mxu0 0.0
        %1776 = vmatpush1.msra.mxu0 %v1740
        %1777 = vmatprep.subr.mxu0 0.0
        %1778 = vmatpush1.msra.mxu0 %v1741
        %1779 = vmatprep.subr.mxu0 0.0
        %1780 = vmatpush1.msra.mxu0 %v1742
        %1781 = vmatprep.subr.mxu0 0.0
        %1782 = vmatpush1.msra.mxu0 %v1743
        %1783 = vmatprep.subr.mxu0 0.0
        %1784 = vmatpush1.msra.mxu0 0.0
        %1785 = vmatprep.subr.mxu0 0.0
        %1786 = vmatpush1.msra.mxu0 0.0
        %1787 = vmatprep.subr.mxu0 0.0
        %1788 = vmatpush1.msra.mxu0 0.0
        %1789 = vmatprep.subr.mxu0 0.0
        %1790 = vmatpush1.msra.mxu0 0.0
        %1791 = vmatprep.subr.mxu0 0.0
        %1792 = vmatpush1.msra.mxu0 0.0
        %1793 = vmatprep.subr.mxu0 0.0
        %1794 = vmatpush1.msra.mxu0 0.0
        %1795 = vmatprep.subr.mxu0 0.0
        %1796 = vmatpush1.msra.mxu0 0.0
        %1797 = vmatprep.subr.mxu0 0.0
        %1798 = vmatpush1.msra.mxu0 0.0
        %1799 = vmatprep.subr.mxu0 0.0
        %1800 = vmatpush1.msra.mxu0 0.0
        %1801 = vmatprep.subr.mxu0 0.0
        %1802 = vmatpush1.msra.mxu0 0.0
        %1803 = vmatprep.subr.mxu0 0.0
        %1804 = vmatpush1.msra.mxu0 0.0
        %1805 = vmatprep.subr.mxu0 0.0
        %1806 = vmatpush1.msra.mxu0 0.0
        %1807 = vmatprep.subr.mxu0 0.0
        %1808 = vmatpush1.msra.mxu0 0.0
        %1809 = vmatprep.subr.mxu0 0.0
        %1810 = vmatpush1.msra.mxu0 0.0
        %1811 = vmatprep.subr.mxu0 0.0
        %1812 = vmatpush1.msra.mxu0 0.0
        %1813 = vmatprep.subr.mxu0 0.0
        %1814 = vmatpush1.msra.mxu0 0.0
        %1815 = vmatprep.mubr.f32.mxu0 0.0
        %1816 = vmatmul.mubr.f32.gmra.mrb[0].mxu0 %v1388
        %v1817 = vpop.f32.mrb[0].mxu0
        %v1818 = vadd.f32 %v1749, %v1817
        %v1819 = vpop.f32.mrb[0].mxu0
        %1820 = vmatprep.mubr.f32.mxu0 0.0
        %1821 = vmatmul.mubr.f32.gmra.mrb[0].mxu0 %v1727
        %v1822 = vpop.f32.mrb[0].mxu0
        %v1823 = vadd.f32 %v1749, %v1822
        %v1824 = vpop.f32.mrb[0].mxu0
        %1825 = vdwg.mxu0
        %v1826 = vadd.f32 %v1818, %v828
        %v1827 = vadd.f32 %v1823, %v829
        %v1828 = vld [vmem:[%s757] sm:$0x1]
        %v1829 = vld [vmem:[%s760] sm:$0x1]
        %1830 = vadd.xlane.f32.xlu0 %v1826
        %v1831 = vpop.xlane.xlu0 %1830
        %1832 = vadd.xlane.f32.xlu0 %v1827
        %v1833 = vpop.xlane.xlu0 %1832
        %v1834 = vrcp.pop 128.0
        %v1835 = vmul.f32 %v1831, %v1834
        %v1836 = vmul.f32 %v1833, %v1834
        %v1837 = vsub.f32 %v1826, %v1835
        %v1838 = vsub.f32 %v1827, %v1836
        %v1839 = vmul.f32 %v1837, %v1837
        %v1840 = vmul.f32 %v1838, %v1838
        %1841 = vadd.xlane.f32.xlu0 %v1839
        %v1842 = vpop.xlane.xlu0 %1841
        %1843 = vadd.xlane.f32.xlu0 %v1840
        %v1844 = vpop.xlane.xlu0 %1843
        %v1845 = vmul.f32 %v1842, %v1834
        %v1846 = vmul.f32 %v1844, %v1834
        %v1847 = vadd.f32 %v1845, 1e-12
        %v1848 = vadd.f32 %v1846, 1e-12
        %v1849 = vrsqrt.pop %v1847
        %v1850 = vrsqrt.pop %v1848
        %v1851 = vmul.f32 %v1837, %v1849
        %v1852 = vmul.f32 %v1838, %v1850
        %v1854 = vlaneseq
        %v1855 = vshrl.u32 %v1854, 7
        %v1856 = vsub.s32 0, %v1855
        %v1857 = vrot.slane %v1828, %v1856
        %v1859 = vmul.f32 %v1851, %v1857
        %v1860 = vmul.f32 %v1852, %v1857
        %v1862 = vlaneseq
        %v1863 = vshrl.u32 %v1862, 7
        %v1864 = vsub.s32 0, %v1863
        %v1865 = vrot.slane %v1829, %v1864
        %v1867 = vadd.f32 %v1859, %v1865
        %v1868 = vadd.f32 %v1860, %v1865
        %v1869 = vld [vmem:[%s765] sm:$0xff]
        %v1870 = vld [vmem:[%s765 + $0x8] sm:$0xff]
        %v1871 = vld [vmem:[%s765 + $0x10] sm:$0xff]
        %v1872 = vld [vmem:[%s765 + $0x18] sm:$0xff]
        %v1873 = vld [vmem:[%s765 + $0x20] sm:$0xff]
        %v1874 = vld [vmem:[%s765 + $0x28] sm:$0xff]
        %v1875 = vld [vmem:[%s765 + $0x30] sm:$0xff]
        %v1876 = vld [vmem:[%s765 + $0x38] sm:$0xff]
        %v1877 = vld [vmem:[%s765 + $0x40] sm:$0xff]
        %v1878 = vld [vmem:[%s765 + $0x48] sm:$0xff]
        %v1879 = vld [vmem:[%s765 + $0x50] sm:$0xff]
        %v1880 = vld [vmem:[%s765 + $0x58] sm:$0xff]
        %v1881 = vld [vmem:[%s765 + $0x60] sm:$0xff]
        %v1882 = vld [vmem:[%s765 + $0x68] sm:$0xff]
        %v1883 = vld [vmem:[%s765 + $0x70] sm:$0xff]
        %v1884 = vld [vmem:[%s765 + $0x78] sm:$0xff]
        %v1885 = vld [vmem:[%s765 + $0x80] sm:$0xff]
        %v1886 = vld [vmem:[%s765 + $0x88] sm:$0xff]
        %v1887 = vld [vmem:[%s765 + $0x90] sm:$0xff]
        %v1888 = vld [vmem:[%s765 + $0x98] sm:$0xff]
        %v1889 = vld [vmem:[%s765 + $0xa0] sm:$0xff]
        %v1890 = vld [vmem:[%s765 + $0xa8] sm:$0xff]
        %v1891 = vld [vmem:[%s765 + $0xb0] sm:$0xff]
        %v1892 = vld [vmem:[%s765 + $0xb8] sm:$0xff]
        %v1893 = vld [vmem:[%s765 + $0xc0] sm:$0xff]
        %v1894 = vld [vmem:[%s765 + $0xc8] sm:$0xff]
        %v1895 = vld [vmem:[%s765 + $0xd0] sm:$0xff]
        %v1896 = vld [vmem:[%s765 + $0xd8] sm:$0xff]
        %v1897 = vld [vmem:[%s765 + $0xe0] sm:$0xff]
        %v1898 = vld [vmem:[%s765 + $0xe8] sm:$0xff]
        %v1899 = vld [vmem:[%s765 + $0xf0] sm:$0xff]
        %v1900 = vld [vmem:[%s765 + $0xf8] sm:$0xff]
        %v1901 = vld [vmem:[%s769] sm:$0x3]
        %v1903 = vlaneseq
        %v1904 = vshrl.u32 %v1903, 7
        %v1905 = vsub.s32 0, %v1904
        %v1906 = vrot.slane %v1901, %v1905
        %v1907 = vlaneseq
        %v1908 = vshrl.u32 %v1907, 7
        %v1909 = vsub.s32 1, %v1908
        %v1910 = vrot.slane %v1901, %v1909
        %1913 = vmatprep.subr.mxu0 %v1870
        %1914 = vmatpush1.msra.mxu0 %v1869
        %1915 = vmatprep.subr.mxu0 %v1872
        %1916 = vmatpush1.msra.mxu0 %v1871
        %1917 = vmatprep.subr.mxu0 %v1874
        %1918 = vmatpush1.msra.mxu0 %v1873
        %1919 = vmatprep.subr.mxu0 %v1876
        %1920 = vmatpush1.msra.mxu0 %v1875
        %1921 = vmatprep.subr.mxu0 %v1878
        %1922 = vmatpush1.msra.mxu0 %v1877
        %1923 = vmatprep.subr.mxu0 %v1880
        %1924 = vmatpush1.msra.mxu0 %v1879
        %1925 = vmatprep.subr.mxu0 %v1882
        %1926 = vmatpush1.msra.mxu0 %v1881
        %1927 = vmatprep.subr.mxu0 %v1884
        %1928 = vmatpush1.msra.mxu0 %v1883
        %1929 = vmatprep.subr.mxu0 %v1886
        %1930 = vmatpush1.msra.mxu0 %v1885
        %1931 = vmatprep.subr.mxu0 %v1888
        %1932 = vmatpush1.msra.mxu0 %v1887
        %1933 = vmatprep.subr.mxu0 %v1890
        %1934 = vmatpush1.msra.mxu0 %v1889
        %1935 = vmatprep.subr.mxu0 %v1892
        %1936 = vmatpush1.msra.mxu0 %v1891
        %1937 = vmatprep.subr.mxu0 %v1894
        %1938 = vmatpush1.msra.mxu0 %v1893
        %1939 = vmatprep.subr.mxu0 %v1896
        %1940 = vmatpush1.msra.mxu0 %v1895
        %1941 = vmatprep.subr.mxu0 %v1898
        %1942 = vmatpush1.msra.mxu0 %v1897
        %1943 = vmatprep.subr.mxu0 %v1900
        %1944 = vmatpush1.msra.mxu0 %v1899
        %1945 = vmatprep.subr.mxu0 0.0
        %1946 = vmatpush1.msra.mxu0 0.0
        %1947 = vmatprep.subr.mxu0 0.0
        %1948 = vmatpush1.msra.mxu0 0.0
        %1949 = vmatprep.subr.mxu0 0.0
        %1950 = vmatpush1.msra.mxu0 0.0
        %1951 = vmatprep.subr.mxu0 0.0
        %1952 = vmatpush1.msra.mxu0 0.0
        %1953 = vmatprep.subr.mxu0 0.0
        %1954 = vmatpush1.msra.mxu0 0.0
        %1955 = vmatprep.subr.mxu0 0.0
        %1956 = vmatpush1.msra.mxu0 0.0
        %1957 = vmatprep.subr.mxu0 0.0
        %1958 = vmatpush1.msra.mxu0 0.0
        %1959 = vmatprep.subr.mxu0 0.0
        %1960 = vmatpush1.msra.mxu0 0.0
        %1961 = vmatprep.subr.mxu0 0.0
        %1962 = vmatpush1.msra.mxu0 0.0
        %1963 = vmatprep.subr.mxu0 0.0
        %1964 = vmatpush1.msra.mxu0 0.0
        %1965 = vmatprep.subr.mxu0 0.0
        %1966 = vmatpush1.msra.mxu0 0.0
        %1967 = vmatprep.subr.mxu0 0.0
        %1968 = vmatpush1.msra.mxu0 0.0
        %1969 = vmatprep.subr.mxu0 0.0
        %1970 = vmatpush1.msra.mxu0 0.0
        %1971 = vmatprep.subr.mxu0 0.0
        %1972 = vmatpush1.msra.mxu0 0.0
        %1973 = vmatprep.subr.mxu0 0.0
        %1974 = vmatpush1.msra.mxu0 0.0
        %1975 = vmatprep.subr.mxu0 0.0
        %1976 = vmatpush1.msra.mxu0 0.0
        %1977 = vmatprep.mubr.f32.mxu0 0.0
        %1978 = vmatmul.mubr.f32.gmra.mrb[0].mxu0 %v1867
        %v1979 = vpop.f32.mrb[0].mxu0
        %v1980 = vadd.f32 %v1906, %v1979
        %v1981 = vpop.f32.mrb[0].mxu0
        %v1982 = vadd.f32 %v1910, %v1981
        %1983 = vmatprep.mubr.f32.mxu0 0.0
        %1984 = vmatmul.mubr.f32.gmra.mrb[0].mxu0 %v1868
        %v1985 = vpop.f32.mrb[0].mxu0
        %v1986 = vadd.f32 %v1906, %v1985
        %v1987 = vpop.f32.mrb[0].mxu0
        %v1988 = vadd.f32 %v1910, %v1987
        %1989 = vdwg.mxu0
        %v1990 = vmul.f32 %v1980, 0.5
        %v1991 = vmul.f32 %v1982, 0.5
        %v1992 = vmul.f32 %v1986, 0.5
        %v1993 = vmul.f32 %v1988, 0.5
        %v1994 = vmul.f32 %v1980, 0.70710677
        %v1995 = vmul.f32 %v1982, 0.70710677
        %v1996 = vmul.f32 %v1986, 0.70710677
        %v1997 = vmul.f32 %v1988, 0.70710677
        %v1998 = verf.f32.pop %v1994
        %v1999 = verf.f32.pop %v1995
        %v2000 = verf.f32.pop %v1996
        %v2001 = verf.f32.pop %v1997
        %v2002 = vadd.f32 %v1998, 1.0
        %v2003 = vadd.f32 %v1999, 1.0
        %v2004 = vadd.f32 %v2000, 1.0
        %v2005 = vadd.f32 %v2001, 1.0
        %v2006 = vmul.f32 %v1990, %v2002
        %v2007 = vmul.f32 %v1991, %v2003
        %v2008 = vmul.f32 %v1992, %v2004
        %v2009 = vmul.f32 %v1993, %v2005
        %v2010 = vld [vmem:[%s654] sm:$0xff]
        %v2011 = vld [vmem:[%s654 + $0x8] sm:$0xff]
        %v2012 = vld [vmem:[%s654 + $0x10] sm:$0xff]
        %v2013 = vld [vmem:[%s654 + $0x18] sm:$0xff]
        %v2014 = vld [vmem:[%s654 + $0x20] sm:$0xff]
        %v2015 = vld [vmem:[%s654 + $0x28] sm:$0xff]
        %v2016 = vld [vmem:[%s654 + $0x30] sm:$0xff]
        %v2017 = vld [vmem:[%s654 + $0x38] sm:$0xff]
        %v2018 = vld [vmem:[%s654 + $0x40] sm:$0xff]
        %v2019 = vld [vmem:[%s654 + $0x48] sm:$0xff]
        %v2020 = vld [vmem:[%s654 + $0x50] sm:$0xff]
        %v2021 = vld [vmem:[%s654 + $0x58] sm:$0xff]
        %v2022 = vld [vmem:[%s654 + $0x60] sm:$0xff]
        %v2023 = vld [vmem:[%s654 + $0x68] sm:$0xff]
        %v2024 = vld [vmem:[%s654 + $0x70] sm:$0xff]
        %v2025 = vld [vmem:[%s654 + $0x78] sm:$0xff]
        %v2026 = vld [vmem:[%s654 + $0x80] sm:$0xff]
        %v2027 = vld [vmem:[%s654 + $0x88] sm:$0xff]
        %v2028 = vld [vmem:[%s654 + $0x90] sm:$0xff]
        %v2029 = vld [vmem:[%s654 + $0x98] sm:$0xff]
        %v2030 = vld [vmem:[%s654 + $0xa0] sm:$0xff]
        %v2031 = vld [vmem:[%s654 + $0xa8] sm:$0xff]
        %v2032 = vld [vmem:[%s654 + $0xb0] sm:$0xff]
        %v2033 = vld [vmem:[%s654 + $0xb8] sm:$0xff]
        %v2034 = vld [vmem:[%s654 + $0xc0] sm:$0xff]
        %v2035 = vld [vmem:[%s654 + $0xc8] sm:$0xff]
        %v2036 = vld [vmem:[%s654 + $0xd0] sm:$0xff]
        %v2037 = vld [vmem:[%s654 + $0xd8] sm:$0xff]
        %v2038 = vld [vmem:[%s654 + $0xe0] sm:$0xff]
        %v2039 = vld [vmem:[%s654 + $0xe8] sm:$0xff]
        %v2040 = vld [vmem:[%s654 + $0xf0] sm:$0xff]
        %v2041 = vld [vmem:[%s654 + $0xf8] sm:$0xff]
        %v2042 = vld [vmem:[%s772] sm:$0x1]
        %v2044 = vlaneseq
        %v2045 = vshrl.u32 %v2044, 7
        %v2046 = vsub.s32 0, %v2045
        %v2047 = vrot.slane %v2042, %v2046
        %2049 = vmatprep.subr.mxu0 0.0
        %2050 = vmatpush1.msra.mxu0 %v2010
        %2051 = vmatprep.subr.mxu0 0.0
        %2052 = vmatpush1.msra.mxu0 %v2011
        %2053 = vmatprep.subr.mxu0 0.0
        %2054 = vmatpush1.msra.mxu0 %v2012
        %2055 = vmatprep.subr.mxu0 0.0
        %2056 = vmatpush1.msra.mxu0 %v2013
        %2057 = vmatprep.subr.mxu0 0.0
        %2058 = vmatpush1.msra.mxu0 %v2014
        %2059 = vmatprep.subr.mxu0 0.0
        %2060 = vmatpush1.msra.mxu0 %v2015
        %2061 = vmatprep.subr.mxu0 0.0
        %2062 = vmatpush1.msra.mxu0 %v2016
        %2063 = vmatprep.subr.mxu0 0.0
        %2064 = vmatpush1.msra.mxu0 %v2017
        %2065 = vmatprep.subr.mxu0 0.0
        %2066 = vmatpush1.msra.mxu0 %v2018
        %2067 = vmatprep.subr.mxu0 0.0
        %2068 = vmatpush1.msra.mxu0 %v2019
        %2069 = vmatprep.subr.mxu0 0.0
        %2070 = vmatpush1.msra.mxu0 %v2020
        %2071 = vmatprep.subr.mxu0 0.0
        %2072 = vmatpush1.msra.mxu0 %v2021
        %2073 = vmatprep.subr.mxu0 0.0
        %2074 = vmatpush1.msra.mxu0 %v2022
        %2075 = vmatprep.subr.mxu0 0.0
        %2076 = vmatpush1.msra.mxu0 %v2023
        %2077 = vmatprep.subr.mxu0 0.0
        %2078 = vmatpush1.msra.mxu0 %v2024
        %2079 = vmatprep.subr.mxu0 0.0
        %2080 = vmatpush1.msra.mxu0 %v2025
        %2081 = vmatprep.subr.mxu0 0.0
        %2082 = vmatpush1.msra.mxu0 %v2026
        %2083 = vmatprep.subr.mxu0 0.0
        %2084 = vmatpush1.msra.mxu0 %v2027
        %2085 = vmatprep.subr.mxu0 0.0
        %2086 = vmatpush1.msra.mxu0 %v2028
        %2087 = vmatprep.subr.mxu0 0.0
        %2088 = vmatpush1.msra.mxu0 %v2029
        %2089 = vmatprep.subr.mxu0 0.0
        %2090 = vmatpush1.msra.mxu0 %v2030
        %2091 = vmatprep.subr.mxu0 0.0
        %2092 = vmatpush1.msra.mxu0 %v2031
        %2093 = vmatprep.subr.mxu0 0.0
        %2094 = vmatpush1.msra.mxu0 %v2032
        %2095 = vmatprep.subr.mxu0 0.0
        %2096 = vmatpush1.msra.mxu0 %v2033
        %2097 = vmatprep.subr.mxu0 0.0
        %2098 = vmatpush1.msra.mxu0 %v2034
        %2099 = vmatprep.subr.mxu0 0.0
        %2100 = vmatpush1.msra.mxu0 %v2035
        %2101 = vmatprep.subr.mxu0 0.0
        %2102 = vmatpush1.msra.mxu0 %v2036
        %2103 = vmatprep.subr.mxu0 0.0
        %2104 = vmatpush1.msra.mxu0 %v2037
        %2105 = vmatprep.subr.mxu0 0.0
        %2106 = vmatpush1.msra.mxu0 %v2038
        %2107 = vmatprep.subr.mxu0 0.0
        %2108 = vmatpush1.msra.mxu0 %v2039
        %2109 = vmatprep.subr.mxu0 0.0
        %2110 = vmatpush1.msra.mxu0 %v2040
        %2111 = vmatprep.subr.mxu0 0.0
        %2112 = vmatpush1.msra.mxu0 %v2041
        %2113 = vmatprep.mubr.f32.mxu0 %v2007
        %2114 = vmatmul.mubr.f32.gmra.mrb[0].mxu0 %v2006
        %v2115 = vpop.f32.mrb[0].mxu0
        %v2116 = vadd.f32 %v2047, %v2115
        %v2117 = vpop.f32.mrb[0].mxu0
        %2118 = vmatprep.mubr.f32.mxu0 %v2009
        %2119 = vmatmul.mubr.f32.gmra.mrb[0].mxu0 %v2008
        %v2120 = vpop.f32.mrb[0].mxu0
        %v2121 = vadd.f32 %v2047, %v2120
        %v2122 = vpop.f32.mrb[0].mxu0
        %2123 = vdwg.mxu0
        %v2124 = vadd.f32 %v2116, %v1867
        %v2125 = vadd.f32 %v2121, %v1868
        %v2126 = vld [vmem:[%s775] sm:$0x1]
        %v2127 = vld [vmem:[%s778] sm:$0x1]
        %2128 = vadd.xlane.f32.xlu0 %v2124
        %v2129 = vpop.xlane.xlu0 %2128
        %2130 = vadd.xlane.f32.xlu0 %v2125
        %v2131 = vpop.xlane.xlu0 %2130
        %v2132 = vmul.f32 %v2129, %v1834
        %v2133 = vmul.f32 %v2131, %v1834
        %v2134 = vsub.f32 %v2124, %v2132
        %v2135 = vsub.f32 %v2125, %v2133
        %v2136 = vmul.f32 %v2134, %v2134
        %v2137 = vmul.f32 %v2135, %v2135
        %2138 = vadd.xlane.f32.xlu0 %v2136
        %v2139 = vpop.xlane.xlu0 %2138
        %2140 = vadd.xlane.f32.xlu0 %v2137
        %v2141 = vpop.xlane.xlu0 %2140
        %v2142 = vmul.f32 %v2139, %v1834
        %v2143 = vmul.f32 %v2141, %v1834
        %v2144 = vadd.f32 %v2142, 1e-12
        %v2145 = vadd.f32 %v2143, 1e-12
        %v2146 = vrsqrt.pop %v2144
        %v2147 = vrsqrt.pop %v2145
        %v2148 = vmul.f32 %v2134, %v2146
        %v2149 = vmul.f32 %v2135, %v2147
        %v2151 = vlaneseq
        %v2152 = vshrl.u32 %v2151, 7
        %v2153 = vsub.s32 0, %v2152
        %v2154 = vrot.slane %v2126, %v2153
        %v2156 = vmul.f32 %v2148, %v2154
        %v2157 = vmul.f32 %v2149, %v2154
        %v2159 = vlaneseq
        %v2160 = vshrl.u32 %v2159, 7
        %v2161 = vsub.s32 0, %v2160
        %v2162 = vrot.slane %v2127, %v2161
        %v2164 = vadd.f32 %v2156, %v2162
        %v2165 = vadd.f32 %v2157, %v2162
        %2166 = vst [vmem:[#allocation2] sm:$0xff] %v2164
        %2167 = vst [vmem:[#allocation2 + $0x8] sm:$0xff] %v2165
        %p2168 = scmp.eq.s32.totalorder %s35, 1
        // Predicated region
        $region105: #{bert_base_uncased_forward.1} parent=91 // pred_check
          %p2169 = pneg %p2168
        $region106: #{bert_base_uncased_forward.1} parent=91 // pred_check_branch
          %2171 = sbr.rel (%p2169) target = $region108
        $region107: #{bert_base_uncased_forward.1} parent=91 // pred_region
          %v2173 = vrot.slane %v2165, 7
          %vm2175 = vcmask 1040384
          %v2176 = vsel %vm2175, %v2164, %v2173
          %v2177 = vld [vmem:[%s16] sm:$0xff]
          %v2178 = vld [vmem:[%s16 + $0x8] sm:$0xff]
          %v2179 = vld [vmem:[%s16 + $0x10] sm:$0xff]
          %v2180 = vld [vmem:[%s16 + $0x18] sm:$0xff]
          %v2181 = vld [vmem:[%s16 + $0x20] sm:$0xff]
          %v2182 = vld [vmem:[%s16 + $0x28] sm:$0xff]
          %v2183 = vld [vmem:[%s16 + $0x30] sm:$0xff]
          %v2184 = vld [vmem:[%s16 + $0x38] sm:$0xff]
          %v2185 = vld [vmem:[%s16 + $0x40] sm:$0xff]
          %v2186 = vld [vmem:[%s16 + $0x48] sm:$0xff]
          %v2187 = vld [vmem:[%s16 + $0x50] sm:$0xff]
          %v2188 = vld [vmem:[%s16 + $0x58] sm:$0xff]
          %v2189 = vld [vmem:[%s16 + $0x60] sm:$0xff]
          %v2190 = vld [vmem:[%s16 + $0x68] sm:$0xff]
          %v2191 = vld [vmem:[%s16 + $0x70] sm:$0xff]
          %v2192 = vld [vmem:[%s16 + $0x78] sm:$0xff]
          %v2193 = vld [vmem:[%s17] sm:$0x1]
          %v2195 = vlaneseq
          %v2196 = vshrl.u32 %v2195, 7
          %v2197 = vsub.s32 0, %v2196
          %v2198 = vrot.slane %v2193, %v2197
          %2200 = vmatprep.subr.mxu0 0.0
          %2201 = vmatpush1.msra.mxu0 %v2177
          %2202 = vmatprep.subr.mxu0 0.0
          %2203 = vmatpush1.msra.mxu0 %v2178
          %2204 = vmatprep.subr.mxu0 0.0
          %2205 = vmatpush1.msra.mxu0 %v2179
          %2206 = vmatprep.subr.mxu0 0.0
          %2207 = vmatpush1.msra.mxu0 %v2180
          %2208 = vmatprep.subr.mxu0 0.0
          %2209 = vmatpush1.msra.mxu0 %v2181
          %2210 = vmatprep.subr.mxu0 0.0
          %2211 = vmatpush1.msra.mxu0 %v2182
          %2212 = vmatprep.subr.mxu0 0.0
          %2213 = vmatpush1.msra.mxu0 %v2183
          %2214 = vmatprep.subr.mxu0 0.0
          %2215 = vmatpush1.msra.mxu0 %v2184
          %2216 = vmatprep.subr.mxu0 0.0
          %2217 = vmatpush1.msra.mxu0 %v2185
          %2218 = vmatprep.subr.mxu0 0.0
          %2219 = vmatpush1.msra.mxu0 %v2186
          %2220 = vmatprep.subr.mxu0 0.0
          %2221 = vmatpush1.msra.mxu0 %v2187
          %2222 = vmatprep.subr.mxu0 0.0
          %2223 = vmatpush1.msra.mxu0 %v2188
          %2224 = vmatprep.subr.mxu0 0.0
          %2225 = vmatpush1.msra.mxu0 %v2189
          %2226 = vmatprep.subr.mxu0 0.0
          %2227 = vmatpush1.msra.mxu0 %v2190
          %2228 = vmatprep.subr.mxu0 0.0
          %2229 = vmatpush1.msra.mxu0 %v2191
          %2230 = vmatprep.subr.mxu0 0.0
          %2231 = vmatpush1.msra.mxu0 %v2192
          %2232 = vmatprep.subr.mxu0 0.0
          %2233 = vmatpush1.msra.mxu0 0.0
          %2234 = vmatprep.subr.mxu0 0.0
          %2235 = vmatpush1.msra.mxu0 0.0
          %2236 = vmatprep.subr.mxu0 0.0
          %2237 = vmatpush1.msra.mxu0 0.0
          %2238 = vmatprep.subr.mxu0 0.0
          %2239 = vmatpush1.msra.mxu0 0.0
          %2240 = vmatprep.subr.mxu0 0.0
          %2241 = vmatpush1.msra.mxu0 0.0
          %2242 = vmatprep.subr.mxu0 0.0
          %2243 = vmatpush1.msra.mxu0 0.0
          %2244 = vmatprep.subr.mxu0 0.0
          %2245 = vmatpush1.msra.mxu0 0.0
          %2246 = vmatprep.subr.mxu0 0.0
          %2247 = vmatpush1.msra.mxu0 0.0
          %2248 = vmatprep.subr.mxu0 0.0
          %2249 = vmatpush1.msra.mxu0 0.0
          %2250 = vmatprep.subr.mxu0 0.0
          %2251 = vmatpush1.msra.mxu0 0.0
          %2252 = vmatprep.subr.mxu0 0.0
          %2253 = vmatpush1.msra.mxu0 0.0
          %2254 = vmatprep.subr.mxu0 0.0
          %2255 = vmatpush1.msra.mxu0 0.0
          %2256 = vmatprep.subr.mxu0 0.0
          %2257 = vmatpush1.msra.mxu0 0.0
          %2258 = vmatprep.subr.mxu0 0.0
          %2259 = vmatpush1.msra.mxu0 0.0
          %2260 = vmatprep.subr.mxu0 0.0
          %2261 = vmatpush1.msra.mxu0 0.0
          %2262 = vmatprep.subr.mxu0 0.0
          %2263 = vmatpush1.msra.mxu0 0.0
          %2264 = vmatprep.mubr.f32.mxu0 0.0
          %2265 = vmatmul.mubr.f32.gmra.mrb[0].mxu0 %v2176
          %v2266 = vpop.f32.mrb[0].mxu0
          %v2267 = vadd.f32 %v2198, %v2266
          %v2268 = vpop.f32.mrb[0].mxu0
          %2269 = vdwg.mxu0
          %2270 = vst [vmem:[%s18] sm:$0x3] %v2267
        $region108: #{bert_base_uncased_forward.1} parent=91 // pred_fallthru
          _
        // Predicated region
        $region109: #{bert_base_uncased_forward.1} parent=91 // pred_check
          %p2271 = pneg %p486
        $region110: #{bert_base_uncased_forward.1} parent=91 // pred_check_branch
          %2273 = sbr.rel (%p2271) target = $region112
        $region111: #{bert_base_uncased_forward.1} parent=91 // pred_region
          _
        $region112: #{bert_base_uncased_forward.1} parent=91 // pred_fallthru
          _
        // Predicated region
        $region113: #{bert_base_uncased_forward.1} parent=91 // pred_check
          %p2274 = pneg %p486
        $region114: #{bert_base_uncased_forward.1} parent=91 // pred_check_branch
          %2276 = sbr.rel (%p2274) target = $region116
        $region115: #{bert_base_uncased_forward.1} parent=91 // pred_region
          _
        $region116: #{bert_base_uncased_forward.1} parent=91 // pred_fallthru
          _
      $region92: #{bert_base_uncased_forward.1} parent=5 // pred_fallthru
        _
      %p2277 = scmp.le.s32.totalorder 2, %s30
      // Predicated region
      $region117: #{bert_base_uncased_forward.1} parent=5 // pred_check
        %p2278 = pneg %p2277
      $region118: #{bert_base_uncased_forward.1} parent=5 // pred_check_branch
        %2280 = sbr.rel (%p2278) target = $region120
      $region119: #{bert_base_uncased_forward.1} parent=5 // pred_region
        %s2281 = ssub.s32 %s30, 2
      $region120: #{bert_base_uncased_forward.1} parent=5 // pred_fallthru
        _
    $region6: #{bert_base_uncased_forward.1} parent=1 // loop_footer
      %s34 = sadd.s32 1, %s30
    $region7: #{bert_base_uncased_forward.1} parent=1 // loop_footer_branch
      %29 = sbr.rel target = $region3
    $region8: #{bert_base_uncased_forward.1} parent=1 // loop_exit
      _
    %2282 = vsyncpa [#allocation4], 1
    %s2283 = scalar_lea.sflag [#allocation4], 1
    %2284 = vsyncpa %s2283, 1
    %2285 = vsyncpa [#allocation6], 1
    %s2286 = scalar_lea.sflag [#allocation6], 1
    %2287 = vsyncpa %s2286, 1

</llo_original>
